<compile_context>
chip_gen: v7x
topology: tpu7x:2x2x1
jax: 0.10.0
libtpu: 0.0.40
codegen_flags: <defaults>
</compile_context>

<pallas_src>
import functools
import math

import jax
import jax.numpy as jnp
from jax import lax
from jax.experimental import pallas as pl
from jax.experimental.pallas import tpu as pltpu


_NEG_BIG = -1e30  # finite "-inf": keeps max/exp NaN-free on fully-masked rows/tiles


def _layernorm(h, w, b, eps=1e-5):
    # Single-pass LN: mean and mean-of-squares together, var = E[x^2] - mu^2.
    mu = jnp.mean(h, axis=-1, keepdims=True)
    ms = jnp.mean(h * h, axis=-1, keepdims=True)
    var = ms - mu * mu
    return (h - mu) * lax.rsqrt(var + eps) * w + b


def _gelu_tanh(x):
    c = math.sqrt(2.0 / math.pi)
    return 0.5 * x * (1.0 + jnp.tanh(c * (x + 0.044715 * x * x * x)))


# --------------------------- kernel 1: shortcut + LN1 + QKV ---------------------------

def _qkv_kernel(lambdas_ref, x_ref, x0_ref, ln1w_ref, ln1b_ref, wattn_ref,
                xc_ref, qkv_ref):
    # embed shortcut (f32 residual stream): x = lambdas[0]*x + lambdas[1]*x0
    xc = lambdas_ref[0] * x_ref[0] + lambdas_ref[1] * x0_ref[0]          # (blk, C) f32
    xc_ref[0] = xc
    h1 = _layernorm(xc, ln1w_ref[...], ln1b_ref[...]).astype(jnp.bfloat16)
    # fused qkv projection; 1/sqrt(hd) already folded into the q columns of the weight.
    qkv_ref[0] = jnp.dot(h1, wattn_ref[...],
                         preferred_element_type=jnp.float32).astype(jnp.bfloat16)


# ----------------- kernel 2: flash attention + proj + residual + LN2 + MLP -----------------

def _attn_mlp_kernel(n_head,
                     xc_ref, q_ref, k_ref, v_ref,
                     ln2w_ref, ln2b_ref, wproj_ref, wgu_ref, wdown_ref,
                     out_ref,
                     m_ref, l_ref, acc_ref):
    tq = q_ref.shape[1]
    tk = k_ref.shape[1]
    C = q_ref.shape[2]
    hd = C // n_head

    qi = pl.program_id(1)
    ki = pl.program_id(2)
    n_kv = pl.num_programs(2)
    q_start = qi * tq
    kv_start = ki * tk

    @pl.when(ki == 0)
    def _init():
        m_ref[...] = jnp.full_like(m_ref, _NEG_BIG)
        l_ref[...] = jnp.zeros_like(l_ref)
        acc_ref[...] = jnp.zeros_like(acc_ref)

    # Skip kv tiles that lie entirely above the causal diagonal for this q tile.
    @pl.when(kv_start <= q_start + tq - 1)
    def _update():
        def heads(x2d, t):
            # (t, C) -> (n_head, t, hd): one reshape + one major-dim transpose per operand
            # (no per-head sub-128-lane slicing).
            return jnp.swapaxes(x2d.reshape(t, n_head, hd), 0, 1)

        qh = heads(q_ref[0], tq)          # bf16; 1/sqrt(hd) pre-folded into W_q
        kh = heads(k_ref[0], tk)
        vh = heads(v_ref[0], tk)
        # use_value_residual with v1=None: v = 0.5*v + 0.5*v == v (exact identity)

        s = jnp.einsum('hqd,hkd->hqk', qh, kh,
                       preferred_element_type=jnp.float32)           # (nh, tq, tk) f32

        # Causal mask as a single additive (tq, tk) bias broadcast over heads.
        # ALiBi bias omitted: (k - q).clamp(min=0) is zero on every causal position.
        rows = lax.broadcasted_iota(jnp.int32, (tq, tk), 0) + q_start
        cols = lax.broadcasted_iota(jnp.int32, (tq, tk), 1) + kv_start
        bias = jnp.where(cols <= rows, 0.0, _NEG_BIG).astype(jnp.float32)
        s = s + bias[None]

        # online softmax update (f32 scores, no bf16 round-trip before softmax)
        m_prev = m_ref[...]                                           # (nh, tq, 1)
        m_new = jnp.maximum(m_prev, jnp.max(s, axis=-1, keepdims=True))
        alpha = jnp.exp(m_prev - m_new)
        p = jnp.exp(s - m_new)
        l_ref[...] = alpha * l_ref[...] + jnp.sum(p, axis=-1, keepdims=True)
        acc_ref[...] = alpha * acc_ref[...] + jnp.einsum(
            'hqk,hkd->hqd', p.astype(jnp.bfloat16), vh,
            preferred_element_type=jnp.float32)
        m_ref[...] = m_new
        # attn_dropout: identity (inference)

    @pl.when(ki == n_kv - 1)
    def _finalize():
        # softmax normalization: EUP approximate reciprocal + VPU multiply
        yh = (acc_ref[...] * pl.reciprocal(l_ref[...], approx=True)).astype(jnp.bfloat16)
        # Head re-pack fused into the output projection: per-head (tq,hd)x(hd,C) matmuls
        # on the MXU, summed over heads (no lane concatenate / repack).
        attn = jnp.sum(jnp.einsum('hqd,hdc->hqc', yh, wproj_ref[...],
                                  preferred_element_type=jnp.float32), axis=0)
        x1 = xc_ref[0] + attn                                         # (tq, C) f32
        # resid_dropout: identity (inference)

        # MLP (LigerGEGLUMLP, gelu_pytorch_tanh); gate & up fused into one matmul.
        h2 = _layernorm(x1, ln2w_ref[...], ln2b_ref[...]).astype(jnp.bfloat16)
        gu = jnp.dot(h2, wgu_ref[...], preferred_element_type=jnp.float32)   # (tq, 4C)
        inter = gu.shape[-1] // 2
        act = (_gelu_tanh(gu[:, :inter]) * gu[:, inter:]).astype(jnp.bfloat16)
        mlp = jnp.dot(act, wdown_ref[...], preferred_element_type=jnp.float32)
        out_ref[0] = x1 + mlp


# ------------------------------------ host wrapper ------------------------------------

def block_forward(params, x, x0, *, blk_t=128, tq=128, tk=128):
    B, T, C = x.shape
    nh = int(params["n_head"])
    hd = C // nh
    blk_t, tq, tk = min(blk_t, T), min(tq, T), min(tk, T)
    assert T % blk_t == 0 and T % tq == 0 and T % tk == 0
    f32, bf16 = jnp.float32, jnp.bfloat16

    # --- one-time weight layout transforms (O(C^2), constant-folded under jit) ---
    col_scale = jnp.concatenate([jnp.full((C,), 1.0 / math.sqrt(hd), f32),
                                 jnp.ones((2 * C,), f32)])
    w_attn = (params["w_attn"].astype(f32) * col_scale[None, :]).astype(bf16)  # (C, 3C)
    w_proj_h = params["w_proj"].reshape(nh, hd, C)                              # (nh, hd, C)
    w_gu = jnp.concatenate([params["w_gate"], params["w_up"]], axis=1)          # (C, 4C)
    w_down = params["w_down"]                                                   # (2C, C)

    def const_spec(shape):
        nd = len(shape)
        # identical block every grid step -> single-buffer it (halves weight VMEM)
        return pl.BlockSpec(shape, lambda *_: (0,) * nd, pipeline_mode=pl.Buffered(1))

    cparams = dict(vmem_limit_bytes=40 * 1024 * 1024)  # fits under v7x's 64 MiB physical VMEM

    # ---------- kernel 1: embed shortcut + LN1 + fused (pre-scaled) qkv projection ----------
    xc, qkv = pl.pallas_call(
        _qkv_kernel,
        out_shape=(jax.ShapeDtypeStruct((B, T, C), f32),
                   jax.ShapeDtypeStruct((B, T, 3 * C), bf16)),
        grid=(B, T // blk_t),
        in_specs=[
            pl.BlockSpec(memory_space=pltpu.MemorySpace.SMEM),        # lambdas (2,)
            pl.BlockSpec((1, blk_t, C), lambda b, t: (b, t, 0)),      # x
            pl.BlockSpec((1, blk_t, C), lambda b, t: (b, t, 0)),      # x0
            const_spec((1, C)), const_spec((1, C)),                   # ln_1 weight / bias
            const_spec((C, 3 * C)),                                   # qkv weight (scaled)
        ],
        out_specs=(pl.BlockSpec((1, blk_t, C), lambda b, t: (b, t, 0)),
                   pl.BlockSpec((1, blk_t, 3 * C), lambda b, t: (b, t, 0))),
        compiler_params=pltpu.CompilerParams(
            dimension_semantics=("parallel", "parallel"), **cparams),
    )(params["lambdas"], x, x0, params["ln1_w"], params["ln1_b"], w_attn)

    # ---------- kernel 2: flash attention + projection + residual + LN2 + GEGLU MLP ----------
    def kv_index(axis):
        def idx(b, q_i, k_i):
            # Clamp above-diagonal kv tiles onto the diagonal tile: compute is skipped for
            # them, and the unchanged block index suppresses the redundant DMA.
            diag = (q_i * tq + tq - 1) // tk
            return (b, jnp.minimum(k_i, diag), axis)
        return idx

    out = pl.pallas_call(
        functools.partial(_attn_mlp_kernel, nh),
        out_shape=jax.ShapeDtypeStruct((B, T, C), f32),
        grid=(B, T // tq, T // tk),
        in_specs=[
            pl.BlockSpec((1, tq, C), lambda b, q_i, k_i: (b, q_i, 0)),  # xc (residual, q tile)
            pl.BlockSpec((1, tq, C), lambda b, q_i, k_i: (b, q_i, 0)),  # q  (qkv view, slot 0)
            pl.BlockSpec((1, tk, C), kv_index(1)),                      # k  (qkv view, slot 1)
            pl.BlockSpec((1, tk, C), kv_index(2)),                      # v  (qkv view, slot 2)
            const_spec((1, C)), const_spec((1, C)),                     # ln_2 weight / bias
            const_spec((nh, hd, C)),                                    # w_proj (head-major)
            const_spec((C, 4 * C)),                                     # fused gate|up
            const_spec((2 * C, C)),                                     # down proj
        ],
        out_specs=pl.BlockSpec((1, tq, C), lambda b, q_i, k_i: (b, q_i, 0)),
        scratch_shapes=[
            pltpu.VMEM((nh, tq, 1), f32),    # running max m
            pltpu.VMEM((nh, tq, 1), f32),    # running denom l
            pltpu.VMEM((nh, tq, hd), f32),   # output accumulator
        ],
        compiler_params=pltpu.CompilerParams(
            dimension_semantics=("parallel", "parallel", "arbitrary"), **cparams),
    )(xc, qkv, qkv, qkv,
      params["ln2_w"], params["ln2_b"], w_proj_h, w_gu, w_down)
    return out


# ------------------------------------ params / reference ------------------------------------

def init_params(key, n_embd, n_head, T):
    ks = jax.random.split(key, 5)
    std = 0.02

    def w(k, shape):
        return (std * jax.random.normal(k, shape, dtype=jnp.float32)).astype(jnp.bfloat16)

    # ALiBi slopes / bias kept ONLY for the pure-JAX reference: the bias is provably zero on
    # every unmasked (causal) position, so the kernel omits it.
    base = (2.0 ** 8) ** (1.0 / n_head)
    slopes = (1.0 / base ** jnp.arange(1, n_head + 1, dtype=jnp.float32)).astype(jnp.bfloat16)
    qpos = jnp.arange(T, dtype=jnp.float32)[:, None]
    kpos = jnp.arange(T, dtype=jnp.float32)[None, :]
    rel = jnp.clip(kpos - qpos, 0.0, None).astype(jnp.bfloat16)
    alibi_bias = slopes[:, None, None] * rel[None]                    # (n_head, T, T)

    return dict(
        n_head=n_head,
        lambdas=jnp.array([1.0, 0.25], dtype=jnp.float32),
        ln1_w=jnp.ones((1, n_embd), jnp.float32),
        ln1_b=jnp.zeros((1, n_embd), jnp.float32),
        ln2_w=jnp.ones((1, n_embd), jnp.float32),
        ln2_b=jnp.zeros((1, n_embd), jnp.float32),
        w_attn=w(ks[0], (n_embd, 3 * n_embd)),
        w_proj=w(ks[1], (n_embd, n_embd)),
        w_gate=w(ks[2], (n_embd, 2 * n_embd)),
        w_up=w(ks[3], (n_embd, 2 * n_embd)),
        w_down=w(ks[4], (2 * n_embd, n_embd)),
        alibi_bias=alibi_bias,
    )


def _reference(params, x, x0):
    """Pure-JAX reference mirroring the PyTorch module's math (sanity check only)."""
    B, T, C = x.shape
    nh = params["n_head"]
    hd = C // nh
    lam = params["lambdas"]
    x = lam[0] * x + lam[1] * x0

    def ln(h, w, b):
        mu = jnp.mean(h, -1, keepdims=True)
        var = jnp.mean((h - mu) ** 2, -1, keepdims=True)
        return (h - mu) / jnp.sqrt(var + 1e-5) * w + b

    h1 = ln(x, params["ln1_w"], params["ln1_b"]).astype(jnp.bfloat16)
    qkv = jnp.einsum("btc,cd->btd", h1, params["w_attn"],
                     preferred_element_type=jnp.float32).astype(jnp.bfloat16)
    q, k, v = jnp.split(qkv, 3, axis=-1)
    q = q.reshape(B, T, nh, hd).transpose(0, 2, 1, 3)
    k = k.reshape(B, T, nh, hd).transpose(0, 2, 1, 3)
    v = v.reshape(B, T, nh, hd).transpose(0, 2, 1, 3)
    att = jnp.einsum("bhqd,bhkd->bhqk", q, k,
                     preferred_element_type=jnp.float32) / math.sqrt(hd)
    att = att.astype(jnp.bfloat16) + params["alibi_bias"][None]
    mask = jnp.tril(jnp.ones((T, T), bool))
    att = jnp.where(mask, att, -jnp.inf).astype(jnp.float32)
    p = jax.nn.softmax(att, axis=-1).astype(jnp.bfloat16)
    y = jnp.einsum("bhqk,bhkd->bhqd", p, v,
                   preferred_element_type=jnp.float32).astype(jnp.bfloat16)
    y = y.transpose(0, 2, 1, 3).reshape(B, T, C)
    attn_out = jnp.einsum("btc,cd->btd", y, params["w_proj"],
                          preferred_element_type=jnp.float32).astype(jnp.bfloat16)
    x = x + attn_out.astype(jnp.float32)

    h2 = ln(x, params["ln2_w"], params["ln2_b"]).astype(jnp.bfloat16)
    gate = jnp.einsum("btc,cd->btd", h2, params["w_gate"],
                      preferred_element_type=jnp.float32)
    up = jnp.einsum("btc,cd->btd", h2, params["w_up"],
                    preferred_element_type=jnp.float32).astype(jnp.bfloat16)
    act = _gelu_tanh(gate).astype(jnp.bfloat16) * up
    mlp = jnp.einsum("btd,dc->btc", act, params["w_down"],
                     preferred_element_type=jnp.float32).astype(jnp.bfloat16)
    return x + mlp.astype(jnp.float32)


if __name__ == "__main__":
    # Small shapes consistent with the module (n_embd % n_head == 0); T=256 with 128-wide
    # q/kv tiles exercises the multi-tile flash path and the causal tile-skip logic.
    B, T, C, NH = 2, 256, 128, 4
    key = jax.random.PRNGKey(0)
    kx, kx0, kp = jax.random.split(key, 3)
    x = jax.random.normal(kx, (B, T, C), dtype=jnp.float32)
    x0 = jax.random.normal(kx0, (B, T, C), dtype=jnp.float32)
    params = init_params(kp, C, NH, T)

    out = jax.block_until_ready(block_forward(params, x, x0))
    ref = jax.block_until_ready(_reference(params, x, x0))

    assert out.shape == (B, T, C)
    assert bool(jnp.all(jnp.isfinite(out)))
    assert bool(jnp.allclose(out, ref, rtol=0.1, atol=0.1))
    print("KERNEL_OK")
</pallas_src>

<mosaic_0001>
module attributes {stable_mosaic.version = 11 : i64} {
  func.func @_qkv_kernel(%arg0: i32, %arg1: i32, %arg2: memref<2xf32, #tpu.memory_space<smem>>, %arg3: memref<1x128x128xf32, #tpu.memory_space<vmem>>, %arg4: memref<1x128x128xf32, #tpu.memory_space<vmem>>, %arg5: memref<1x128xf32, #tpu.memory_space<vmem>>, %arg6: memref<1x128xf32, #tpu.memory_space<vmem>>, %arg7: memref<128x384xbf16, #tpu.memory_space<vmem>>, %arg8: memref<1x128x128xf32, #tpu.memory_space<vmem>>, %arg9: memref<1x128x384xbf16, #tpu.memory_space<vmem>>) attributes {dimension_semantics = [#tpu.dimension_semantics<parallel>, #tpu.dimension_semantics<parallel>], iteration_bounds = array<i64: 2, 2>, scalar_prefetch = 0 : i64, scratch_operands = 0 : i64, tpu.core_type = #tpu.core_type<tc>, window_params = [{transform_indices = @transform_0, window_bounds = array<i64: 2>}, {transform_indices = @transform_1, window_bounds = array<i64: 1, 128, 128>}, {transform_indices = @transform_2, window_bounds = array<i64: 1, 128, 128>}, {pipeline_mode = #tpu.pipeline_mode<synchronous>, transform_indices = @transform_3, window_bounds = array<i64: 1, 128>}, {pipeline_mode = #tpu.pipeline_mode<synchronous>, transform_indices = @transform_4, window_bounds = array<i64: 1, 128>}, {pipeline_mode = #tpu.pipeline_mode<synchronous>, transform_indices = @transform_5, window_bounds = array<i64: 128, 384>}, {transform_indices = @transform_6, window_bounds = array<i64: 1, 128, 128>}, {transform_indices = @transform_7, window_bounds = array<i64: 1, 128, 384>}]} {
    %c0 = arith.constant 0 : index
    %0 = memref.load %arg2[%c0] : memref<2xf32, #tpu.memory_space<smem>>
    %c0_0 = arith.constant 0 : index
    %c0_1 = arith.constant 0 : index
    %c0_2 = arith.constant 0 : index
    %1 = vector.load %arg3[%c0_0, %c0_1, %c0_2] : memref<1x128x128xf32, #tpu.memory_space<vmem>>, vector<1x128x128xf32>
    %2 = vector.shape_cast %1 : vector<1x128x128xf32> to vector<128x128xf32>
    %3 = vector.broadcast %0 : f32 to vector<128x128xf32>
    %4 = arith.mulf %3, %2 : vector<128x128xf32>
    %c1 = arith.constant 1 : index
    %5 = memref.load %arg2[%c1] : memref<2xf32, #tpu.memory_space<smem>>
    %c0_3 = arith.constant 0 : index
    %c0_4 = arith.constant 0 : index
    %c0_5 = arith.constant 0 : index
    %6 = vector.load %arg4[%c0_3, %c0_4, %c0_5] : memref<1x128x128xf32, #tpu.memory_space<vmem>>, vector<1x128x128xf32>
    %7 = vector.shape_cast %6 : vector<1x128x128xf32> to vector<128x128xf32>
    %8 = vector.broadcast %5 : f32 to vector<128x128xf32>
    %9 = arith.mulf %8, %7 : vector<128x128xf32>
    %10 = arith.addf %4, %9 : vector<128x128xf32>
    %c0_6 = arith.constant 0 : index
    %c0_7 = arith.constant 0 : index
    %c0_8 = arith.constant 0 : index
    %11 = vector.load %arg8[%c0_6, %c0_7, %c0_8] : memref<1x128x128xf32, #tpu.memory_space<vmem>>, vector<1x128x128xf32>
    %12 = vector.shape_cast %11 : vector<1x128x128xf32> to vector<128x128xf32>
    %13 = vector.shape_cast %10 : vector<128x128xf32> to vector<1x128x128xf32>
    tpu.vector_store %arg8[%c0_6, %c0_7, %c0_8], %13 {strides = array<i32>} : memref<1x128x128xf32, #tpu.memory_space<vmem>>, vector<1x128x128xf32>,
    %c0_9 = arith.constant 0 : index
    %c0_10 = arith.constant 0 : index
    %14 = vector.load %arg5[%c0_9, %c0_10] : memref<1x128xf32, #tpu.memory_space<vmem>>, vector<1x128xf32>
    %c0_11 = arith.constant 0 : index
    %c0_12 = arith.constant 0 : index
    %15 = vector.load %arg6[%c0_11, %c0_12] : memref<1x128xf32, #tpu.memory_space<vmem>>, vector<1x128xf32>
    %cst = arith.constant dense<0.000000e+00> : vector<128xf32>
    %16 = vector.multi_reduction <add>, %10, %cst [1] : vector<128x128xf32> to vector<128xf32>
    %17 = vector.shape_cast %16 : vector<128xf32> to vector<128x1xf32>
    %cst_13 = arith.constant 1.280000e+02 : f32
    %18 = vector.broadcast %cst_13 : f32 to vector<128x1xf32>
    %19 = arith.divf %17, %18 : vector<128x1xf32>
    %20 = arith.mulf %10, %10 : vector<128x128xf32>
    %cst_14 = arith.constant dense<0.000000e+00> : vector<128xf32>
    %21 = vector.multi_reduction <add>, %20, %cst_14 [1] : vector<128x128xf32> to vector<128xf32>
    %22 = vector.shape_cast %21 : vector<128xf32> to vector<128x1xf32>
    %cst_15 = arith.constant 1.280000e+02 : f32
    %23 = vector.broadcast %cst_15 : f32 to vector<128x1xf32>
    %24 = arith.divf %22, %23 : vector<128x1xf32>
    %25 = arith.mulf %19, %19 : vector<128x1xf32>
    %26 = arith.subf %24, %25 : vector<128x1xf32>
    %27 = vector.broadcast %19 : vector<128x1xf32> to vector<128x128xf32>
    %28 = arith.subf %10, %27 : vector<128x128xf32>
    %cst_16 = arith.constant 9.99999974E-6 : f32
    %29 = vector.broadcast %cst_16 : f32 to vector<128x1xf32>
    %30 = arith.addf %26, %29 : vector<128x1xf32>
    %31 = math.rsqrt %30 : vector<128x1xf32>
    %32 = vector.broadcast %31 : vector<128x1xf32> to vector<128x128xf32>
    %33 = arith.mulf %28, %32 : vector<128x128xf32>
    %34 = vector.broadcast %14 : vector<1x128xf32> to vector<128x128xf32>
    %35 = arith.mulf %33, %34 : vector<128x128xf32>
    %36 = vector.broadcast %15 : vector<1x128xf32> to vector<128x128xf32>
    %37 = arith.addf %35, %36 : vector<128x128xf32>
    %38 = arith.truncf %37 : vector<128x128xf32> to vector<128x128xbf16>
    %c0_17 = arith.constant 0 : index
    %c0_18 = arith.constant 0 : index
    %39 = vector.load %arg7[%c0_17, %c0_18] : memref<128x384xbf16, #tpu.memory_space<vmem>>, vector<128x384xbf16>
    %cst_19 = arith.constant dense<0.000000e+00> : vector<128x384xf32>
    %40 = tpu.matmul %38, %39, %cst_19 {dimension_numbers = #tpu.dot_dimension_numbers<[1], [0], [0], [1], [0, 0, 1, 1], [], []>} : vector<128x128xbf16>, vector<128x384xbf16>, vector<128x384xf32> -> vector<128x384xf32>
    %41 = arith.truncf %40 : vector<128x384xf32> to vector<128x384xbf16>
    %c0_20 = arith.constant 0 : index
    %c0_21 = arith.constant 0 : index
    %c0_22 = arith.constant 0 : index
    %42 = vector.load %arg9[%c0_20, %c0_21, %c0_22] : memref<1x128x384xbf16, #tpu.memory_space<vmem>>, vector<1x128x384xbf16>
    %43 = vector.shape_cast %42 : vector<1x128x384xbf16> to vector<128x384xbf16>
    %44 = vector.shape_cast %41 : vector<128x384xbf16> to vector<1x128x384xbf16>
    tpu.vector_store %arg9[%c0_20, %c0_21, %c0_22], %44 {strides = array<i32>} : memref<1x128x384xbf16, #tpu.memory_space<vmem>>, vector<1x128x384xbf16>,
    return
  }
  func.func @transform_0(%arg0: i32, %arg1: i32) -> i32 {
    %c0_i32 = arith.constant 0 : i32
    %c0_i32_0 = arith.constant 0 : i32
    return %c0_i32 : i32
  }
  func.func @transform_1(%arg0: i32, %arg1: i32) -> (i32, i32, i32) {
    %c0_i32 = arith.constant 0 : i32
    %c0_i32_0 = arith.constant 0 : i32
    return %arg0, %arg1, %c0_i32 : i32, i32, i32
  }
  func.func @transform_2(%arg0: i32, %arg1: i32) -> (i32, i32, i32) {
    %c0_i32 = arith.constant 0 : i32
    %c0_i32_0 = arith.constant 0 : i32
    return %arg0, %arg1, %c0_i32 : i32, i32, i32
  }
  func.func @transform_3(%arg0: i32, %arg1: i32) -> (i32, i32) {
    %c0_i32 = arith.constant 0 : i32
    %c0_i32_0 = arith.constant 0 : i32
    %c0_i32_1 = arith.constant 0 : i32
    return %c0_i32, %c0_i32_0 : i32, i32
  }
  func.func @transform_4(%arg0: i32, %arg1: i32) -> (i32, i32) {
    %c0_i32 = arith.constant 0 : i32
    %c0_i32_0 = arith.constant 0 : i32
    %c0_i32_1 = arith.constant 0 : i32
    return %c0_i32, %c0_i32_0 : i32, i32
  }
  func.func @transform_5(%arg0: i32, %arg1: i32) -> (i32, i32) {
    %c0_i32 = arith.constant 0 : i32
    %c0_i32_0 = arith.constant 0 : i32
    %c0_i32_1 = arith.constant 0 : i32
    return %c0_i32, %c0_i32_0 : i32, i32
  }
  func.func @transform_6(%arg0: i32, %arg1: i32) -> (i32, i32, i32) {
    %c0_i32 = arith.constant 0 : i32
    %c0_i32_0 = arith.constant 0 : i32
    return %arg0, %arg1, %c0_i32 : i32, i32, i32
  }
  func.func @transform_7(%arg0: i32, %arg1: i32) -> (i32, i32, i32) {
    %c0_i32 = arith.constant 0 : i32
    %c0_i32_0 = arith.constant 0 : i32
    return %arg0, %arg1, %c0_i32 : i32, i32, i32
  }
}

</mosaic_0001>

<llo_original>
// kernel: tpu_custom_call.1
$region0: #{tpu_custom_call.1}
  #allocation0 [shape = 'u32[]', space=smem, size = 0x4, offset = 0x4, fixed_abs, tag = 'smem constant byte address 0x4 - core index']
  #allocation1 [shape = 'u32[144,128]{1,0:T(1,128)}', space=vmem, size = 0x12000, scoped, tag = 'internal scratch']
  %s0 = inlined_call_operand.hbm [shape: f32[2], index: 0, kind: input, shape index: {}]
  %s1 = inlined_call_operand.hbm [shape: f32[2,256,128], index: 1, kind: input, shape index: {}]
  %s2 = inlined_call_operand.hbm [shape: f32[2,256,128], index: 2, kind: input, shape index: {}]
  %s3 = inlined_call_operand.vmem [shape: f32[1,128], index: 3, kind: input, shape index: {}]
  %s4 = inlined_call_operand.vmem [shape: f32[1,128], index: 4, kind: input, shape index: {}]
  %s5 = inlined_call_operand.hbm [shape: bf16[128,384], index: 5, kind: input, shape index: {}]
  %s6 = inlined_call_operand.hbm [shape: f32[2,256,128], index: 6, kind: output, shape index: {0}]
  %s7 = inlined_call_operand.hbm [shape: bf16[2,256,384], index: 7, kind: output, shape index: {1}]
  %8 = xla_tuple %s6, %s7
  %s9 = sld [smem:[#allocation0]]
  $region81: #{tpu_custom_call.1} parent=0
    _
  %s11 = ssub.s32 1, %s9
  %s12 = scalar_select 0, %s11, %s9
  $region1: #{tpu_custom_call.1} parent=0
    #allocation2 [shape = 'u8[512]{0}', space=smem, size = 0x200, scoped, tag = 'input window, operand 0, single buffered']
    #allocation3 [shape = 's32[2]{0}', space=sflag, size = 0x8, scoped, tag = 'scoped memory for tpu_custom_call.1']
    #allocation4 [shape = 's32[2]{0}', space=sflag, size = 0x8, scoped, tag = 'scoped memory for tpu_custom_call.1']
    #allocation5 [shape = 's32[2]{0}', space=sflag, size = 0x8, scoped, tag = 'scoped memory for tpu_custom_call.1']
    #allocation6 [shape = 'u8[131072]{0}', space=vmem, size = 0x20000, scoped, tag = 'input window, operand 1']
    #allocation7 [shape = 'u8[131072]{0}', space=vmem, size = 0x20000, scoped, tag = 'input window, operand 2']
    #allocation8 [shape = 's32[2]{0}', space=sflag, size = 0x8, scoped, tag = 'scoped memory for tpu_custom_call.1']
    #allocation9 [shape = 'u8[98304]{0}', space=vmem, size = 0x18000, scoped, tag = 'input window, operand 5, single buffered']
    #allocation10 [shape = 'u8[131072]{0}', space=vmem, size = 0x20000, scoped, tag = 'output window, operand 0']
    #allocation11 [shape = 'u8[196608]{0}', space=vmem, size = 0x30000, scoped, tag = 'output window, operand 1']
    #allocation12 [shape = 's32[2]{0}', space=sflag, size = 0x8, scoped, tag = 'scoped memory for tpu_custom_call.1']
    %13 = vsyncpa [#allocation5], 0
    %14 = vsyncpa [#allocation3], 0
    %s15 = scalar_lea.sflag [#allocation3], 1
    %16 = vsyncpa %s15, 0
    %17 = vsyncpa [#allocation8], 0
    %s18 = scalar_lea.sflag [#allocation8], 1
    %19 = vsyncpa %s18, 0
    %20 = vsyncpa [#allocation4], 0
    %s21 = scalar_lea.sflag [#allocation4], 1
    %22 = vsyncpa %s21, 0
    %23 = vsyncpa [#allocation12], 0
    %s24 = scalar_lea.sflag [#allocation12], 1
    %25 = vsyncpa %s24, 0
    loop: start=0, step=1, limit=6
    $region2: #{tpu_custom_call.1} parent=1 // loop_pre_header
      _
    $region3: #{tpu_custom_call.1} parent=1 // loop_header
      %s27 = sphi 0, %s31
      %p28 = scmp.ge.s32.totalorder %s27, 6
      %s34 = sphi 0, %s46
      %s35 = sphi 0, %s42
      %s36 = sphi 0, %s34
      %s37 = sphi 0, %s35
      %s38 = sphi 0, %s36
      %s39 = sphi 0, %s37
      %s47 = sphi 0, %s47
      %s49 = sphi 0, %s47
      %s50 = sphi 0, %s49
      %s64 = sphi 0, %s50
      %s72 = sphi 0, %s74
      %s75 = sphi 0, %s72
      %s76 = sphi 0, %s75
      %s92 = sphi 0, %s76
      %s100 = sphi 0, %s102
      %s103 = sphi 0, %s100
      %s104 = sphi 0, %s103
      %s120 = sphi 0, %s104
      %s124 = sphi 0, %s124
      %s126 = sphi 0, %s124
      %s127 = sphi 0, %s126
      %s141 = sphi 0, %s127
      %s145 = sphi 0, %s145
      %s147 = sphi 0, %s145
      %s148 = sphi 0, %s147
      %s162 = sphi 0, %s148
      %s166 = sphi 0, %s166
      %s168 = sphi 0, %s166
      %s169 = sphi 0, %s168
      %s183 = sphi 0, %s169
      %s191 = sphi 0, %s193
      %s194 = sphi 0, %s191
      %s195 = sphi 0, %s194
      %s211 = sphi 0, %s195
      %s219 = sphi 0, %s221
      %s222 = sphi 0, %s219
      %s223 = sphi 0, %s222
      %s239 = sphi 0, %s223
    $region4: #{tpu_custom_call.1} parent=1 // loop_header_branch
      %30 = sbr.rel (%p28) target = $region8
    $region5: #{tpu_custom_call.1} parent=1 // loop_body
      %s32 = ssub.s32 %s27, 1
      %s33 = ssub.s32 %s27, 2
      %s40 = sadd.s32 1, %s35
      %p41 = scmp.ge.s32.totalorder %s40, 2
      %s42 = scalar_select %p41, 0, %s40
      %s43 = sadd.s32 1, %s34
      %s44 = scalar_select %p41, %s43, %s34
      %p45 = scmp.ge.s32.totalorder %s44, 2
      %s46 = scalar_select %p45, 0, %s44
      %s48 = sadd.s32 %s47, 1
      %p51 = scmp.eq.s32.totalorder %s27, 3
      %p52 = scmp.ne.s32.totalorder %s47, %s49
      %p53 = scmp.eq.s32.totalorder %s27, 0
      %p54 = por %p52, %p53
      %p55 = scmp.ne.s32.totalorder %s47, %s49
      %p56 = scmp.eq.s32.totalorder %s32, 3
      %p57 = por %p55, %p56
      %p58 = scmp.ne.s32.totalorder %s49, %s50
      %p59 = scmp.eq.s32.totalorder %s32, 0
      %p60 = por %p58, %p59
      %p61 = scmp.ne.s32.totalorder %s49, %s50
      %p62 = scmp.eq.s32.totalorder %s33, 3
      %p63 = por %p61, %p62
      %p65 = scmp.ne.s32.totalorder %s50, %s64
      %p66 = scmp.eq.s32.totalorder %s33, 0
      %p67 = por %p65, %p66
      %s68 = ssub.s32 %s34, %s46
      %s69 = ssub.s32 %s35, %s42
      %s70 = sor.u32 %s68, %s69
      %p71 = scmp.eq.s32.totalorder %s70, 0
      %s73 = sadd.s32 %s72, 1
      %s74 = scalar_select %p71, %s72, %s73
      %p77 = pneg %p71
      %p78 = scmp.eq.s32.totalorder %s27, 3
      %p79 = por %p77, %p78
      %p80 = scmp.ne.s32.totalorder %s72, %s75
      %p81 = scmp.eq.s32.totalorder %s27, 0
      %p82 = por %p80, %p81
      %p83 = scmp.ne.s32.totalorder %s72, %s75
      %p84 = scmp.eq.s32.totalorder %s32, 3
      %p85 = por %p83, %p84
      %p86 = scmp.ne.s32.totalorder %s75, %s76
      %p87 = scmp.eq.s32.totalorder %s32, 0
      %p88 = por %p86, %p87
      %p89 = scmp.ne.s32.totalorder %s75, %s76
      %p90 = scmp.eq.s32.totalorder %s33, 3
      %p91 = por %p89, %p90
      %p93 = scmp.ne.s32.totalorder %s76, %s92
      %p94 = scmp.eq.s32.totalorder %s33, 0
      %p95 = por %p93, %p94
      %s96 = ssub.s32 %s34, %s46
      %s97 = ssub.s32 %s35, %s42
      %s98 = sor.u32 %s96, %s97
      %p99 = scmp.eq.s32.totalorder %s98, 0
      %s101 = sadd.s32 %s100, 1
      %s102 = scalar_select %p99, %s100, %s101
      %p105 = pneg %p99
      %p106 = scmp.eq.s32.totalorder %s27, 3
      %p107 = por %p105, %p106
      %p108 = scmp.ne.s32.totalorder %s100, %s103
      %p109 = scmp.eq.s32.totalorder %s27, 0
      %p110 = por %p108, %p109
      %p111 = scmp.ne.s32.totalorder %s100, %s103
      %p112 = scmp.eq.s32.totalorder %s32, 3
      %p113 = por %p111, %p112
      %p114 = scmp.ne.s32.totalorder %s103, %s104
      %p115 = scmp.eq.s32.totalorder %s32, 0
      %p116 = por %p114, %p115
      %p117 = scmp.ne.s32.totalorder %s103, %s104
      %p118 = scmp.eq.s32.totalorder %s33, 3
      %p119 = por %p117, %p118
      %p121 = scmp.ne.s32.totalorder %s104, %s120
      %p122 = scmp.eq.s32.totalorder %s33, 0
      %p123 = por %p121, %p122
      %s125 = sadd.s32 %s124, 1
      %p128 = scmp.eq.s32.totalorder %s27, 3
      %p129 = scmp.ne.s32.totalorder %s124, %s126
      %p130 = scmp.eq.s32.totalorder %s27, 0
      %p131 = por %p129, %p130
      %p132 = scmp.ne.s32.totalorder %s124, %s126
      %p133 = scmp.eq.s32.totalorder %s32, 3
      %p134 = por %p132, %p133
      %p135 = scmp.ne.s32.totalorder %s126, %s127
      %p136 = scmp.eq.s32.totalorder %s32, 0
      %p137 = por %p135, %p136
      %p138 = scmp.ne.s32.totalorder %s126, %s127
      %p139 = scmp.eq.s32.totalorder %s33, 3
      %p140 = por %p138, %p139
      %p142 = scmp.ne.s32.totalorder %s127, %s141
      %p143 = scmp.eq.s32.totalorder %s33, 0
      %p144 = por %p142, %p143
      %s146 = sadd.s32 %s145, 1
      %p149 = scmp.eq.s32.totalorder %s27, 3
      %p150 = scmp.ne.s32.totalorder %s145, %s147
      %p151 = scmp.eq.s32.totalorder %s27, 0
      %p152 = por %p150, %p151
      %p153 = scmp.ne.s32.totalorder %s145, %s147
      %p154 = scmp.eq.s32.totalorder %s32, 3
      %p155 = por %p153, %p154
      %p156 = scmp.ne.s32.totalorder %s147, %s148
      %p157 = scmp.eq.s32.totalorder %s32, 0
      %p158 = por %p156, %p157
      %p159 = scmp.ne.s32.totalorder %s147, %s148
      %p160 = scmp.eq.s32.totalorder %s33, 3
      %p161 = por %p159, %p160
      %p163 = scmp.ne.s32.totalorder %s148, %s162
      %p164 = scmp.eq.s32.totalorder %s33, 0
      %p165 = por %p163, %p164
      %s167 = sadd.s32 %s166, 1
      %p170 = scmp.eq.s32.totalorder %s27, 3
      %p171 = scmp.ne.s32.totalorder %s166, %s168
      %p172 = scmp.eq.s32.totalorder %s27, 0
      %p173 = por %p171, %p172
      %p174 = scmp.ne.s32.totalorder %s166, %s168
      %p175 = scmp.eq.s32.totalorder %s32, 3
      %p176 = por %p174, %p175
      %p177 = scmp.ne.s32.totalorder %s168, %s169
      %p178 = scmp.eq.s32.totalorder %s32, 0
      %p179 = por %p177, %p178
      %p180 = scmp.ne.s32.totalorder %s168, %s169
      %p181 = scmp.eq.s32.totalorder %s33, 3
      %p182 = por %p180, %p181
      %p184 = scmp.ne.s32.totalorder %s169, %s183
      %p185 = scmp.eq.s32.totalorder %s33, 0
      %p186 = por %p184, %p185
      %s187 = ssub.s32 %s34, %s46
      %s188 = ssub.s32 %s35, %s42
      %s189 = sor.u32 %s187, %s188
      %p190 = scmp.eq.s32.totalorder %s189, 0
      %s192 = sadd.s32 %s191, 1
      %s193 = scalar_select %p190, %s191, %s192
      %p196 = pneg %p190
      %p197 = scmp.eq.s32.totalorder %s27, 3
      %p198 = por %p196, %p197
      %p199 = scmp.ne.s32.totalorder %s191, %s194
      %p200 = scmp.eq.s32.totalorder %s27, 0
      %p201 = por %p199, %p200
      %p202 = scmp.ne.s32.totalorder %s191, %s194
      %p203 = scmp.eq.s32.totalorder %s32, 3
      %p204 = por %p202, %p203
      %p205 = scmp.ne.s32.totalorder %s194, %s195
      %p206 = scmp.eq.s32.totalorder %s32, 0
      %p207 = por %p205, %p206
      %p208 = scmp.ne.s32.totalorder %s194, %s195
      %p209 = scmp.eq.s32.totalorder %s33, 3
      %p210 = por %p208, %p209
      %p212 = scmp.ne.s32.totalorder %s195, %s211
      %p213 = scmp.eq.s32.totalorder %s33, 0
      %p214 = por %p212, %p213
      %s215 = ssub.s32 %s34, %s46
      %s216 = ssub.s32 %s35, %s42
      %s217 = sor.u32 %s215, %s216
      %p218 = scmp.eq.s32.totalorder %s217, 0
      %s220 = sadd.s32 %s219, 1
      %s221 = scalar_select %p218, %s219, %s220
      %p224 = pneg %p218
      %p225 = scmp.eq.s32.totalorder %s27, 3
      %p226 = por %p224, %p225
      %p227 = scmp.ne.s32.totalorder %s219, %s222
      %p228 = scmp.eq.s32.totalorder %s27, 0
      %p229 = por %p227, %p228
      %p230 = scmp.ne.s32.totalorder %s219, %s222
      %p231 = scmp.eq.s32.totalorder %s32, 3
      %p232 = por %p230, %p231
      %p233 = scmp.ne.s32.totalorder %s222, %s223
      %p234 = scmp.eq.s32.totalorder %s32, 0
      %p235 = por %p233, %p234
      %p236 = scmp.ne.s32.totalorder %s222, %s223
      %p237 = scmp.eq.s32.totalorder %s33, 3
      %p238 = por %p236, %p237
      %p240 = scmp.ne.s32.totalorder %s223, %s239
      %p241 = scmp.eq.s32.totalorder %s33, 0
      %p242 = por %p240, %p241
      %p243 = scmp.le.s32.totalorder 1, %s27
      %p244 = scmp.lt.s32.totalorder %s27, 5
      %p245 = pnand %p243, %p244
      %p246 = pneg %p245
      // Predicated region
      $region9: #{tpu_custom_call.1} parent=5 // pred_check
        _
      $region10: #{tpu_custom_call.1} parent=5 // pred_check_branch
        %248 = sbr.rel (%p245) target = $region12
      $region11: #{tpu_custom_call.1} parent=5 // pred_region
        %s249 = ssub.s32 %s27, 1
        // Predicated region
        $region13: #{tpu_custom_call.1} parent=11 // pred_check
          %p250 = pneg %p60
        $region14: #{tpu_custom_call.1} parent=11 // pred_check_branch
          %252 = sbr.rel (%p250) target = $region16
        $region15: #{tpu_custom_call.1} parent=11 // pred_region
          %s254 = ssub.s32 16, 16
          %255 = vsyncadd [#allocation5], %s254
          %258 = dma.hbm_to_smem %s0, 16, [#allocation2], [#allocation5]
        $region16: #{tpu_custom_call.1} parent=11 // pred_fallthru
          _
        // Predicated region
        $region17: #{tpu_custom_call.1} parent=11 // pred_check
          %p259 = pneg %p137
        $region18: #{tpu_custom_call.1} parent=11 // pred_check_branch
          %261 = sbr.rel (%p259) target = $region20
        $region19: #{tpu_custom_call.1} parent=11 // pred_region
          _
        $region20: #{tpu_custom_call.1} parent=11 // pred_fallthru
          _
        // Predicated region
        $region21: #{tpu_custom_call.1} parent=11 // pred_check
          %p262 = pneg %p158
        $region22: #{tpu_custom_call.1} parent=11 // pred_check_branch
          %264 = sbr.rel (%p262) target = $region24
        $region23: #{tpu_custom_call.1} parent=11 // pred_region
          _
        $region24: #{tpu_custom_call.1} parent=11 // pred_fallthru
          _
        // Predicated region
        $region25: #{tpu_custom_call.1} parent=11 // pred_check
          %p265 = pneg %p179
        $region26: #{tpu_custom_call.1} parent=11 // pred_check_branch
          %267 = sbr.rel (%p265) target = $region28
        $region27: #{tpu_custom_call.1} parent=11 // pred_region
          %s269 = ssub.s32 3072, 3072
          %270 = vsyncadd [#allocation8], %s269
          %s271 = sshll.u32 [#allocation9], 4
          %s272 = int_to_ptr.vmem [resolvable:$true] %s271
          %277 = dma.hbm_to_vmem [thread:$0]  %s5, 3072, %s272, [#allocation8], 192, 192, 12
        $region28: #{tpu_custom_call.1} parent=11 // pred_fallthru
          _
      $region12: #{tpu_custom_call.1} parent=5 // pred_fallthru
        _
      %p278 = scmp.lt.s32.totalorder %s27, 4
      // Predicated region
      $region29: #{tpu_custom_call.1} parent=5 // pred_check
        %p279 = pneg %p278
      $region30: #{tpu_custom_call.1} parent=5 // pred_check_branch
        %281 = sbr.rel (%p279) target = $region32
      $region31: #{tpu_custom_call.1} parent=5 // pred_region
        // Predicated region
        $region33: #{tpu_custom_call.1} parent=31 // pred_check
          %p282 = pneg %p82
        $region34: #{tpu_custom_call.1} parent=31 // pred_check_branch
          %284 = sbr.rel (%p282) target = $region36
        $region35: #{tpu_custom_call.1} parent=31 // pred_region
          %s285 = sand.u32 %s72, 1
          %s286 = scalar_lea.sflag [#allocation3], %s285
          %s287 = sand.u32 %s72, 1
          %s288 = smul.addr %s287, 128
          %s289 = scalar_lea.vmem [#allocation6], %s288
          %s290 = smul.u32 16, %s35
          %s292 = ssub.s32 2048, 2048
          %293 = vsyncadd %s286, %s292
          %s294 = smul.addr %s34, 32
          %s295 = sadd.s32 %s290, %s294
          %s296 = smul.addr %s295, 128
          %s297 = scalar_lea.hbm %s1, %s296
          %s298 = sshll.u32 %s289, 4
          %s299 = int_to_ptr.vmem [resolvable:$true] %s298
          %304 = dma.hbm_to_vmem [thread:$0]  %s297, 2048, %s299, %s286, 128, 128, 8
        $region36: #{tpu_custom_call.1} parent=31 // pred_fallthru
          _
        // Predicated region
        $region37: #{tpu_custom_call.1} parent=31 // pred_check
          %p305 = pneg %p110
        $region38: #{tpu_custom_call.1} parent=31 // pred_check_branch
          %307 = sbr.rel (%p305) target = $region40
        $region39: #{tpu_custom_call.1} parent=31 // pred_region
          %s308 = sand.u32 %s27, 1
          %s309 = scalar_lea.sflag [#allocation8], %s308
          %s310 = sand.u32 %s100, 1
          %s311 = smul.addr %s310, 128
          %s312 = scalar_lea.vmem [#allocation7], %s311
          %s313 = smul.u32 16, %s35
          %s315 = ssub.s32 2048, 2048
          %316 = vsyncadd %s309, %s315
          %s317 = smul.addr %s34, 32
          %s318 = sadd.s32 %s313, %s317
          %s319 = smul.addr %s318, 128
          %s320 = scalar_lea.hbm %s2, %s319
          %s321 = sshll.u32 %s312, 4
          %s322 = int_to_ptr.vmem [resolvable:$true] %s321
          %327 = dma.hbm_to_vmem [thread:$0]  %s320, 2048, %s322, %s309, 128, 128, 8
        $region40: #{tpu_custom_call.1} parent=31 // pred_fallthru
          _
      $region32: #{tpu_custom_call.1} parent=5 // pred_fallthru
        _
      %p328 = scmp.le.s32.totalorder 1, %s27
      %p329 = scmp.lt.s32.totalorder %s27, 5
      %p330 = pnand %p328, %p329
      %p331 = pneg %p330
      // Predicated region
      $region41: #{tpu_custom_call.1} parent=5 // pred_check
        _
      $region42: #{tpu_custom_call.1} parent=5 // pred_check_branch
        %333 = sbr.rel (%p330) target = $region44
      $region43: #{tpu_custom_call.1} parent=5 // pred_region
        %s334 = ssub.s32 %s27, 1
        // Predicated region
        $region45: #{tpu_custom_call.1} parent=43 // pred_check
          %p335 = pneg %p60
        $region46: #{tpu_custom_call.1} parent=43 // pred_check_branch
          %337 = sbr.rel (%p335) target = $region48
        $region47: #{tpu_custom_call.1} parent=43 // pred_region
          %338 = dma.done [#allocation5], 16
        $region48: #{tpu_custom_call.1} parent=43 // pred_fallthru
          _
        %s339 = sand.u32 %s75, 1
        %s340 = scalar_lea.sflag [#allocation3], %s339
        %s341 = sand.u32 %s75, 1
        %s342 = smul.addr %s341, 128
        %s343 = scalar_lea.vmem [#allocation6], %s342
        // Predicated region
        $region49: #{tpu_custom_call.1} parent=43 // pred_check
          %p344 = pneg %p88
        $region50: #{tpu_custom_call.1} parent=43 // pred_check_branch
          %346 = sbr.rel (%p344) target = $region52
        $region51: #{tpu_custom_call.1} parent=43 // pred_region
          %347 = dma.done %s340, 2048
        $region52: #{tpu_custom_call.1} parent=43 // pred_fallthru
          _
        %s348 = sand.u32 %s32, 1
        %s349 = scalar_lea.sflag [#allocation8], %s348
        %s350 = sand.u32 %s103, 1
        %s351 = smul.addr %s350, 128
        %s352 = scalar_lea.vmem [#allocation7], %s351
        // Predicated region
        $region53: #{tpu_custom_call.1} parent=43 // pred_check
          %p353 = pneg %p116
        $region54: #{tpu_custom_call.1} parent=43 // pred_check_branch
          %355 = sbr.rel (%p353) target = $region56
        $region55: #{tpu_custom_call.1} parent=43 // pred_region
          %356 = dma.done %s349, 2048
        $region56: #{tpu_custom_call.1} parent=43 // pred_fallthru
          _
        // Predicated region
        $region57: #{tpu_custom_call.1} parent=43 // pred_check
          %p357 = pneg %p179
        $region58: #{tpu_custom_call.1} parent=43 // pred_check_branch
          %359 = sbr.rel (%p357) target = $region60
        $region59: #{tpu_custom_call.1} parent=43 // pred_region
          %360 = dma.done [#allocation8], 3072
        $region60: #{tpu_custom_call.1} parent=43 // pred_fallthru
          _
        %361 = sfence
        %p362 = pneg %p60
        %p363 = pneg %p57
        %s364 = sand.u32 %s75, 1
        %s365 = scalar_lea.sflag [#allocation3], %s364
        %s366 = sand.u32 %s75, 1
        %s367 = smul.addr %s366, 128
        %s368 = scalar_lea.vmem [#allocation6], %s367
        %p369 = pneg %p88
        %p370 = pneg %p85
        %s371 = sand.u32 %s32, 1
        %s372 = scalar_lea.sflag [#allocation8], %s371
        %s373 = sand.u32 %s103, 1
        %s374 = smul.addr %s373, 128
        %s375 = scalar_lea.vmem [#allocation7], %s374
        %p376 = pneg %p116
        %p377 = pneg %p113
        %p378 = pneg %p137
        %p379 = pneg %p134
        %p380 = pneg %p158
        %p381 = pneg %p155
        %p382 = pneg %p179
        %p383 = pneg %p176
        %p384 = pneg %p207
        %p385 = pneg %p204
        %s386 = sand.u32 %s194, 1
        %s387 = scalar_lea.sflag [#allocation4], %s386
        %s388 = sand.u32 %s194, 1
        %s389 = smul.addr %s388, 128
        %s390 = scalar_lea.vmem [#allocation10], %s389
        %p391 = pneg %p235
        %p392 = pneg %p232
        %s393 = sand.u32 %s222, 1
        %s394 = scalar_lea.sflag [#allocation12], %s393
        %s395 = sand.u32 %s222, 1
        %s396 = smul.addr %s395, 192
        %s397 = scalar_lea.vmem [#allocation11], %s396
        %s398 = smul.u32 16, %s37
        %s399 = smul.u32 16, %s37
        %s400 = smul.u32 16, %s37
        %s401 = smul.u32 16, %s37
        %s403 = sld [smem:[#allocation2]]
        %v404 = vld [vmem:[%s343] sm:$0xff]
        %v405 = vld [vmem:[%s343 + $0x8] sm:$0xff]
        %v406 = vld [vmem:[%s343 + $0x10] sm:$0xff]
        %v407 = vld [vmem:[%s343 + $0x18] sm:$0xff]
        %v408 = vld [vmem:[%s343 + $0x20] sm:$0xff]
        %v409 = vld [vmem:[%s343 + $0x28] sm:$0xff]
        %v410 = vld [vmem:[%s343 + $0x30] sm:$0xff]
        %v411 = vld [vmem:[%s343 + $0x38] sm:$0xff]
        %v412 = vld [vmem:[%s343 + $0x40] sm:$0xff]
        %v413 = vld [vmem:[%s343 + $0x48] sm:$0xff]
        %v414 = vld [vmem:[%s343 + $0x50] sm:$0xff]
        %v415 = vld [vmem:[%s343 + $0x58] sm:$0xff]
        %v416 = vld [vmem:[%s343 + $0x60] sm:$0xff]
        %v417 = vld [vmem:[%s343 + $0x68] sm:$0xff]
        %v418 = vld [vmem:[%s343 + $0x70] sm:$0xff]
        %v419 = vld [vmem:[%s343 + $0x78] sm:$0xff]
        %v420 = vstv %s403
        %v421 = vmul.f32 %v420, %v404
        %v422 = vmul.f32 %v420, %v405
        %v423 = vmul.f32 %v420, %v406
        %v424 = vmul.f32 %v420, %v407
        %v425 = vmul.f32 %v420, %v408
        %v426 = vmul.f32 %v420, %v409
        %v427 = vmul.f32 %v420, %v410
        %v428 = vmul.f32 %v420, %v411
        %v429 = vmul.f32 %v420, %v412
        %v430 = vmul.f32 %v420, %v413
        %v431 = vmul.f32 %v420, %v414
        %v432 = vmul.f32 %v420, %v415
        %v433 = vmul.f32 %v420, %v416
        %v434 = vmul.f32 %v420, %v417
        %v435 = vmul.f32 %v420, %v418
        %v436 = vmul.f32 %v420, %v419
        %s437 = sld [smem:[#allocation2 + $0x1]]
        %v438 = vld [vmem:[%s352] sm:$0xff]
        %v439 = vld [vmem:[%s352 + $0x8] sm:$0xff]
        %v440 = vld [vmem:[%s352 + $0x10] sm:$0xff]
        %v441 = vld [vmem:[%s352 + $0x18] sm:$0xff]
        %v442 = vld [vmem:[%s352 + $0x20] sm:$0xff]
        %v443 = vld [vmem:[%s352 + $0x28] sm:$0xff]
        %v444 = vld [vmem:[%s352 + $0x30] sm:$0xff]
        %v445 = vld [vmem:[%s352 + $0x38] sm:$0xff]
        %v446 = vld [vmem:[%s352 + $0x40] sm:$0xff]
        %v447 = vld [vmem:[%s352 + $0x48] sm:$0xff]
        %v448 = vld [vmem:[%s352 + $0x50] sm:$0xff]
        %v449 = vld [vmem:[%s352 + $0x58] sm:$0xff]
        %v450 = vld [vmem:[%s352 + $0x60] sm:$0xff]
        %v451 = vld [vmem:[%s352 + $0x68] sm:$0xff]
        %v452 = vld [vmem:[%s352 + $0x70] sm:$0xff]
        %v453 = vld [vmem:[%s352 + $0x78] sm:$0xff]
        %v454 = vstv %s437
        %v455 = vmul.f32 %v454, %v438
        %v456 = vmul.f32 %v454, %v439
        %v457 = vmul.f32 %v454, %v440
        %v458 = vmul.f32 %v454, %v441
        %v459 = vmul.f32 %v454, %v442
        %v460 = vmul.f32 %v454, %v443
        %v461 = vmul.f32 %v454, %v444
        %v462 = vmul.f32 %v454, %v445
        %v463 = vmul.f32 %v454, %v446
        %v464 = vmul.f32 %v454, %v447
        %v465 = vmul.f32 %v454, %v448
        %v466 = vmul.f32 %v454, %v449
        %v467 = vmul.f32 %v454, %v450
        %v468 = vmul.f32 %v454, %v451
        %v469 = vmul.f32 %v454, %v452
        %v470 = vmul.f32 %v454, %v453
        %v471 = vadd.f32 %v421, %v455
        %v472 = vadd.f32 %v422, %v456
        %v473 = vadd.f32 %v423, %v457
        %v474 = vadd.f32 %v424, %v458
        %v475 = vadd.f32 %v425, %v459
        %v476 = vadd.f32 %v426, %v460
        %v477 = vadd.f32 %v427, %v461
        %v478 = vadd.f32 %v428, %v462
        %v479 = vadd.f32 %v429, %v463
        %v480 = vadd.f32 %v430, %v464
        %v481 = vadd.f32 %v431, %v465
        %v482 = vadd.f32 %v432, %v466
        %v483 = vadd.f32 %v433, %v467
        %v484 = vadd.f32 %v434, %v468
        %v485 = vadd.f32 %v435, %v469
        %v486 = vadd.f32 %v436, %v470
        %487 = vst [vmem:[%s390] sm:$0xff] %v471
        %488 = vst [vmem:[%s390 + $0x8] sm:$0xff] %v472
        %489 = vst [vmem:[%s390 + $0x10] sm:$0xff] %v473
        %490 = vst [vmem:[%s390 + $0x18] sm:$0xff] %v474
        %491 = vst [vmem:[%s390 + $0x20] sm:$0xff] %v475
        %492 = vst [vmem:[%s390 + $0x28] sm:$0xff] %v476
        %493 = vst [vmem:[%s390 + $0x30] sm:$0xff] %v477
        %494 = vst [vmem:[%s390 + $0x38] sm:$0xff] %v478
        %495 = vst [vmem:[%s390 + $0x40] sm:$0xff] %v479
        %496 = vst [vmem:[%s390 + $0x48] sm:$0xff] %v480
        %497 = vst [vmem:[%s390 + $0x50] sm:$0xff] %v481
        %498 = vst [vmem:[%s390 + $0x58] sm:$0xff] %v482
        %499 = vst [vmem:[%s390 + $0x60] sm:$0xff] %v483
        %500 = vst [vmem:[%s390 + $0x68] sm:$0xff] %v484
        %501 = vst [vmem:[%s390 + $0x70] sm:$0xff] %v485
        %502 = vst [vmem:[%s390 + $0x78] sm:$0xff] %v486
        %v503 = vld [vmem:[%s3] sm:$0x1]
        %v504 = vld [vmem:[%s4] sm:$0x1]
        %505 = vadd.xlane.f32.xlu0 %v471
        %v506 = vpop.xlane.xlu0 %505
        %507 = vadd.xlane.f32.xlu0 %v472
        %v508 = vpop.xlane.xlu0 %507
        %509 = vadd.xlane.f32.xlu0 %v473
        %v510 = vpop.xlane.xlu0 %509
        %511 = vadd.xlane.f32.xlu0 %v474
        %v512 = vpop.xlane.xlu0 %511
        %513 = vadd.xlane.f32.xlu0 %v475
        %v514 = vpop.xlane.xlu0 %513
        %515 = vadd.xlane.f32.xlu0 %v476
        %v516 = vpop.xlane.xlu0 %515
        %517 = vadd.xlane.f32.xlu0 %v477
        %v518 = vpop.xlane.xlu0 %517
        %519 = vadd.xlane.f32.xlu0 %v478
        %v520 = vpop.xlane.xlu0 %519
        %521 = vadd.xlane.f32.xlu0 %v479
        %v522 = vpop.xlane.xlu0 %521
        %523 = vadd.xlane.f32.xlu0 %v480
        %v524 = vpop.xlane.xlu0 %523
        %525 = vadd.xlane.f32.xlu0 %v481
        %v526 = vpop.xlane.xlu0 %525
        %527 = vadd.xlane.f32.xlu0 %v482
        %v528 = vpop.xlane.xlu0 %527
        %529 = vadd.xlane.f32.xlu0 %v483
        %v530 = vpop.xlane.xlu0 %529
        %531 = vadd.xlane.f32.xlu0 %v484
        %v532 = vpop.xlane.xlu0 %531
        %533 = vadd.xlane.f32.xlu0 %v485
        %v534 = vpop.xlane.xlu0 %533
        %535 = vadd.xlane.f32.xlu0 %v486
        %v536 = vpop.xlane.xlu0 %535
        %v537 = vrcp.pop 128.0
        %v538 = vmul.f32 %v506, %v537
        %v539 = vmul.f32 %v508, %v537
        %v540 = vmul.f32 %v510, %v537
        %v541 = vmul.f32 %v512, %v537
        %v542 = vmul.f32 %v514, %v537
        %v543 = vmul.f32 %v516, %v537
        %v544 = vmul.f32 %v518, %v537
        %v545 = vmul.f32 %v520, %v537
        %v546 = vmul.f32 %v522, %v537
        %v547 = vmul.f32 %v524, %v537
        %v548 = vmul.f32 %v526, %v537
        %v549 = vmul.f32 %v528, %v537
        %v550 = vmul.f32 %v530, %v537
        %v551 = vmul.f32 %v532, %v537
        %v552 = vmul.f32 %v534, %v537
        %v553 = vmul.f32 %v536, %v537
        %v554 = vmul.f32 %v471, %v471
        %v555 = vmul.f32 %v472, %v472
        %v556 = vmul.f32 %v473, %v473
        %v557 = vmul.f32 %v474, %v474
        %v558 = vmul.f32 %v475, %v475
        %v559 = vmul.f32 %v476, %v476
        %v560 = vmul.f32 %v477, %v477
        %v561 = vmul.f32 %v478, %v478
        %v562 = vmul.f32 %v479, %v479
        %v563 = vmul.f32 %v480, %v480
        %v564 = vmul.f32 %v481, %v481
        %v565 = vmul.f32 %v482, %v482
        %v566 = vmul.f32 %v483, %v483
        %v567 = vmul.f32 %v484, %v484
        %v568 = vmul.f32 %v485, %v485
        %v569 = vmul.f32 %v486, %v486
        %570 = vadd.xlane.f32.xlu0 %v554
        %v571 = vpop.xlane.xlu0 %570
        %572 = vadd.xlane.f32.xlu0 %v555
        %v573 = vpop.xlane.xlu0 %572
        %574 = vadd.xlane.f32.xlu0 %v556
        %v575 = vpop.xlane.xlu0 %574
        %576 = vadd.xlane.f32.xlu0 %v557
        %v577 = vpop.xlane.xlu0 %576
        %578 = vadd.xlane.f32.xlu0 %v558
        %v579 = vpop.xlane.xlu0 %578
        %580 = vadd.xlane.f32.xlu0 %v559
        %v581 = vpop.xlane.xlu0 %580
        %582 = vadd.xlane.f32.xlu0 %v560
        %v583 = vpop.xlane.xlu0 %582
        %584 = vadd.xlane.f32.xlu0 %v561
        %v585 = vpop.xlane.xlu0 %584
        %586 = vadd.xlane.f32.xlu0 %v562
        %v587 = vpop.xlane.xlu0 %586
        %588 = vadd.xlane.f32.xlu0 %v563
        %v589 = vpop.xlane.xlu0 %588
        %590 = vadd.xlane.f32.xlu0 %v564
        %v591 = vpop.xlane.xlu0 %590
        %592 = vadd.xlane.f32.xlu0 %v565
        %v593 = vpop.xlane.xlu0 %592
        %594 = vadd.xlane.f32.xlu0 %v566
        %v595 = vpop.xlane.xlu0 %594
        %596 = vadd.xlane.f32.xlu0 %v567
        %v597 = vpop.xlane.xlu0 %596
        %598 = vadd.xlane.f32.xlu0 %v568
        %v599 = vpop.xlane.xlu0 %598
        %600 = vadd.xlane.f32.xlu0 %v569
        %v601 = vpop.xlane.xlu0 %600
        %v602 = vmul.f32 %v571, %v537
        %v603 = vmul.f32 %v573, %v537
        %v604 = vmul.f32 %v575, %v537
        %v605 = vmul.f32 %v577, %v537
        %v606 = vmul.f32 %v579, %v537
        %v607 = vmul.f32 %v581, %v537
        %v608 = vmul.f32 %v583, %v537
        %v609 = vmul.f32 %v585, %v537
        %v610 = vmul.f32 %v587, %v537
        %v611 = vmul.f32 %v589, %v537
        %v612 = vmul.f32 %v591, %v537
        %v613 = vmul.f32 %v593, %v537
        %v614 = vmul.f32 %v595, %v537
        %v615 = vmul.f32 %v597, %v537
        %v616 = vmul.f32 %v599, %v537
        %v617 = vmul.f32 %v601, %v537
        %v618 = vmul.f32 %v538, %v538
        %v619 = vmul.f32 %v539, %v539
        %v620 = vmul.f32 %v540, %v540
        %v621 = vmul.f32 %v541, %v541
        %v622 = vmul.f32 %v542, %v542
        %v623 = vmul.f32 %v543, %v543
        %v624 = vmul.f32 %v544, %v544
        %v625 = vmul.f32 %v545, %v545
        %v626 = vmul.f32 %v546, %v546
        %v627 = vmul.f32 %v547, %v547
        %v628 = vmul.f32 %v548, %v548
        %v629 = vmul.f32 %v549, %v549
        %v630 = vmul.f32 %v550, %v550
        %v631 = vmul.f32 %v551, %v551
        %v632 = vmul.f32 %v552, %v552
        %v633 = vmul.f32 %v553, %v553
        %v634 = vsub.f32 %v602, %v618
        %v635 = vsub.f32 %v603, %v619
        %v636 = vsub.f32 %v604, %v620
        %v637 = vsub.f32 %v605, %v621
        %v638 = vsub.f32 %v606, %v622
        %v639 = vsub.f32 %v607, %v623
        %v640 = vsub.f32 %v608, %v624
        %v641 = vsub.f32 %v609, %v625
        %v642 = vsub.f32 %v610, %v626
        %v643 = vsub.f32 %v611, %v627
        %v644 = vsub.f32 %v612, %v628
        %v645 = vsub.f32 %v613, %v629
        %v646 = vsub.f32 %v614, %v630
        %v647 = vsub.f32 %v615, %v631
        %v648 = vsub.f32 %v616, %v632
        %v649 = vsub.f32 %v617, %v633
        %v650 = vsub.f32 %v471, %v538
        %v651 = vsub.f32 %v472, %v539
        %v652 = vsub.f32 %v473, %v540
        %v653 = vsub.f32 %v474, %v541
        %v654 = vsub.f32 %v475, %v542
        %v655 = vsub.f32 %v476, %v543
        %v656 = vsub.f32 %v477, %v544
        %v657 = vsub.f32 %v478, %v545
        %v658 = vsub.f32 %v479, %v546
        %v659 = vsub.f32 %v480, %v547
        %v660 = vsub.f32 %v481, %v548
        %v661 = vsub.f32 %v482, %v549
        %v662 = vsub.f32 %v483, %v550
        %v663 = vsub.f32 %v484, %v551
        %v664 = vsub.f32 %v485, %v552
        %v665 = vsub.f32 %v486, %v553
        %v666 = vadd.f32 %v634, 1e-05
        %v667 = vadd.f32 %v635, 1e-05
        %v668 = vadd.f32 %v636, 1e-05
        %v669 = vadd.f32 %v637, 1e-05
        %v670 = vadd.f32 %v638, 1e-05
        %v671 = vadd.f32 %v639, 1e-05
        %v672 = vadd.f32 %v640, 1e-05
        %v673 = vadd.f32 %v641, 1e-05
        %v674 = vadd.f32 %v642, 1e-05
        %v675 = vadd.f32 %v643, 1e-05
        %v676 = vadd.f32 %v644, 1e-05
        %v677 = vadd.f32 %v645, 1e-05
        %v678 = vadd.f32 %v646, 1e-05
        %v679 = vadd.f32 %v647, 1e-05
        %v680 = vadd.f32 %v648, 1e-05
        %v681 = vadd.f32 %v649, 1e-05
        %v682 = vrsqrt.pop %v666
        %v683 = vrsqrt.pop %v667
        %v684 = vrsqrt.pop %v668
        %v685 = vrsqrt.pop %v669
        %v686 = vrsqrt.pop %v670
        %v687 = vrsqrt.pop %v671
        %v688 = vrsqrt.pop %v672
        %v689 = vrsqrt.pop %v673
        %v690 = vrsqrt.pop %v674
        %v691 = vrsqrt.pop %v675
        %v692 = vrsqrt.pop %v676
        %v693 = vrsqrt.pop %v677
        %v694 = vrsqrt.pop %v678
        %v695 = vrsqrt.pop %v679
        %v696 = vrsqrt.pop %v680
        %v697 = vrsqrt.pop %v681
        %v698 = vmul.f32 %v650, %v682
        %v699 = vmul.f32 %v651, %v683
        %v700 = vmul.f32 %v652, %v684
        %v701 = vmul.f32 %v653, %v685
        %v702 = vmul.f32 %v654, %v686
        %v703 = vmul.f32 %v655, %v687
        %v704 = vmul.f32 %v656, %v688
        %v705 = vmul.f32 %v657, %v689
        %v706 = vmul.f32 %v658, %v690
        %v707 = vmul.f32 %v659, %v691
        %v708 = vmul.f32 %v660, %v692
        %v709 = vmul.f32 %v661, %v693
        %v710 = vmul.f32 %v662, %v694
        %v711 = vmul.f32 %v663, %v695
        %v712 = vmul.f32 %v664, %v696
        %v713 = vmul.f32 %v665, %v697
        %v715 = vlaneseq
        %v716 = vshrl.u32 %v715, 7
        %v717 = vsub.s32 0, %v716
        %v718 = vrot.slane %v503, %v717
        %v720 = vmul.f32 %v698, %v718
        %v721 = vmul.f32 %v699, %v718
        %v722 = vmul.f32 %v700, %v718
        %v723 = vmul.f32 %v701, %v718
        %v724 = vmul.f32 %v702, %v718
        %v725 = vmul.f32 %v703, %v718
        %v726 = vmul.f32 %v704, %v718
        %v727 = vmul.f32 %v705, %v718
        %v728 = vmul.f32 %v706, %v718
        %v729 = vmul.f32 %v707, %v718
        %v730 = vmul.f32 %v708, %v718
        %v731 = vmul.f32 %v709, %v718
        %v732 = vmul.f32 %v710, %v718
        %v733 = vmul.f32 %v711, %v718
        %v734 = vmul.f32 %v712, %v718
        %v735 = vmul.f32 %v713, %v718
        %v737 = vlaneseq
        %v738 = vshrl.u32 %v737, 7
        %v739 = vsub.s32 0, %v738
        %v740 = vrot.slane %v504, %v739
        %v742 = vadd.f32 %v720, %v740
        %v743 = vadd.f32 %v721, %v740
        %v744 = vadd.f32 %v722, %v740
        %v745 = vadd.f32 %v723, %v740
        %v746 = vadd.f32 %v724, %v740
        %v747 = vadd.f32 %v725, %v740
        %v748 = vadd.f32 %v726, %v740
        %v749 = vadd.f32 %v727, %v740
        %v750 = vadd.f32 %v728, %v740
        %v751 = vadd.f32 %v729, %v740
        %v752 = vadd.f32 %v730, %v740
        %v753 = vadd.f32 %v731, %v740
        %v754 = vadd.f32 %v732, %v740
        %v755 = vadd.f32 %v733, %v740
        %v756 = vadd.f32 %v734, %v740
        %v757 = vadd.f32 %v735, %v740
        %v758 = vpack.c.bf16 %v743, %v742
        %v759 = vpack.c.bf16 %v745, %v744
        %v760 = vpack.c.bf16 %v747, %v746
        %v761 = vpack.c.bf16 %v749, %v748
        %v762 = vpack.c.bf16 %v751, %v750
        %v763 = vpack.c.bf16 %v753, %v752
        %v764 = vpack.c.bf16 %v755, %v754
        %v765 = vpack.c.bf16 %v757, %v756
        %v766 = vld [vmem:[#allocation9] sm:$0xff]
        %v767 = vld [vmem:[#allocation9 + $0x8] sm:$0xf]
        %v768 = vld [vmem:[#allocation9 + $0xc] sm:$0xff]
        %v769 = vld [vmem:[#allocation9 + $0x14] sm:$0xf]
        %v770 = vld [vmem:[#allocation9 + $0x18] sm:$0xff]
        %v771 = vld [vmem:[#allocation9 + $0x20] sm:$0xf]
        %v772 = vld [vmem:[#allocation9 + $0x24] sm:$0xff]
        %v773 = vld [vmem:[#allocation9 + $0x2c] sm:$0xf]
        %v774 = vld [vmem:[#allocation9 + $0x30] sm:$0xff]
        %v775 = vld [vmem:[#allocation9 + $0x38] sm:$0xf]
        %v776 = vld [vmem:[#allocation9 + $0x3c] sm:$0xff]
        %v777 = vld [vmem:[#allocation9 + $0x44] sm:$0xf]
        %v778 = vld [vmem:[#allocation9 + $0x48] sm:$0xff]
        %v779 = vld [vmem:[#allocation9 + $0x50] sm:$0xf]
        %v780 = vld [vmem:[#allocation9 + $0x54] sm:$0xff]
        %v781 = vld [vmem:[#allocation9 + $0x5c] sm:$0xf]
        %v782 = vld [vmem:[#allocation9 + $0x60] sm:$0xff]
        %v783 = vld [vmem:[#allocation9 + $0x68] sm:$0xf]
        %v784 = vld [vmem:[#allocation9 + $0x6c] sm:$0xff]
        %v785 = vld [vmem:[#allocation9 + $0x74] sm:$0xf]
        %v786 = vld [vmem:[#allocation9 + $0x78] sm:$0xff]
        %v787 = vld [vmem:[#allocation9 + $0x80] sm:$0xf]
        %v788 = vld [vmem:[#allocation9 + $0x84] sm:$0xff]
        %v789 = vld [vmem:[#allocation9 + $0x8c] sm:$0xf]
        %v790 = vld [vmem:[#allocation9 + $0x90] sm:$0xff]
        %v791 = vld [vmem:[#allocation9 + $0x98] sm:$0xf]
        %v792 = vld [vmem:[#allocation9 + $0x9c] sm:$0xff]
        %v793 = vld [vmem:[#allocation9 + $0xa4] sm:$0xf]
        %v794 = vld [vmem:[#allocation9 + $0xa8] sm:$0xff]
        %v795 = vld [vmem:[#allocation9 + $0xb0] sm:$0xf]
        %v796 = vld [vmem:[#allocation9 + $0xb4] sm:$0xff]
        %v797 = vld [vmem:[#allocation9 + $0xbc] sm:$0xf]
        %v830 = vunpack.c.l.b16 %v766
        %v831 = vunpack.c.h.b16 %v766
        %v832 = vunpack.c.l.b16 %v767
        %v833 = vunpack.c.l.b16 %v768
        %v834 = vunpack.c.h.b16 %v768
        %v835 = vunpack.c.l.b16 %v769
        %v836 = vunpack.c.l.b16 %v770
        %v837 = vunpack.c.h.b16 %v770
        %v838 = vunpack.c.l.b16 %v771
        %v839 = vunpack.c.l.b16 %v772
        %v840 = vunpack.c.h.b16 %v772
        %v841 = vunpack.c.l.b16 %v773
        %v842 = vunpack.c.l.b16 %v774
        %v843 = vunpack.c.h.b16 %v774
        %v844 = vunpack.c.l.b16 %v775
        %v845 = vunpack.c.l.b16 %v776
        %v846 = vunpack.c.h.b16 %v776
        %v847 = vunpack.c.l.b16 %v777
        %v848 = vunpack.c.l.b16 %v778
        %v849 = vunpack.c.h.b16 %v778
        %v850 = vunpack.c.l.b16 %v779
        %v851 = vunpack.c.l.b16 %v780
        %v852 = vunpack.c.h.b16 %v780
        %v853 = vunpack.c.l.b16 %v781
        %v854 = vunpack.c.l.b16 %v782
        %v855 = vunpack.c.h.b16 %v782
        %v856 = vunpack.c.l.b16 %v783
        %v857 = vunpack.c.l.b16 %v784
        %v858 = vunpack.c.h.b16 %v784
        %v859 = vunpack.c.l.b16 %v785
        %v860 = vunpack.c.l.b16 %v786
        %v861 = vunpack.c.h.b16 %v786
        %v862 = vunpack.c.l.b16 %v787
        %v863 = vunpack.c.l.b16 %v788
        %v864 = vunpack.c.h.b16 %v788
        %v865 = vunpack.c.l.b16 %v789
        %v866 = vunpack.c.l.b16 %v790
        %v867 = vunpack.c.h.b16 %v790
        %v868 = vunpack.c.l.b16 %v791
        %v869 = vunpack.c.l.b16 %v792
        %v870 = vunpack.c.h.b16 %v792
        %v871 = vunpack.c.l.b16 %v793
        %v872 = vunpack.c.l.b16 %v794
        %v873 = vunpack.c.h.b16 %v794
        %v874 = vunpack.c.l.b16 %v795
        %v875 = vunpack.c.l.b16 %v796
        %v876 = vunpack.c.h.b16 %v796
        %v877 = vunpack.c.l.b16 %v797
        %v878 = vpack.c.b16 %v833, %v830
        %v879 = vpack.c.b16 %v834, %v831
        %v880 = vpack.c.b16 %v835, %v832
        %v881 = vpack.c.b16 %v839, %v836
        %v882 = vpack.c.b16 %v840, %v837
        %v883 = vpack.c.b16 %v841, %v838
        %v884 = vpack.c.b16 %v845, %v842
        %v885 = vpack.c.b16 %v846, %v843
        %v886 = vpack.c.b16 %v847, %v844
        %v887 = vpack.c.b16 %v851, %v848
        %v888 = vpack.c.b16 %v852, %v849
        %v889 = vpack.c.b16 %v853, %v850
        %v890 = vpack.c.b16 %v857, %v854
        %v891 = vpack.c.b16 %v858, %v855
        %v892 = vpack.c.b16 %v859, %v856
        %v893 = vpack.c.b16 %v863, %v860
        %v894 = vpack.c.b16 %v864, %v861
        %v895 = vpack.c.b16 %v865, %v862
        %v896 = vpack.c.b16 %v869, %v866
        %v897 = vpack.c.b16 %v870, %v867
        %v898 = vpack.c.b16 %v871, %v868
        %v899 = vpack.c.b16 %v875, %v872
        %v900 = vpack.c.b16 %v876, %v873
        %v901 = vpack.c.b16 %v877, %v874
        %926 = vmatprep.subr.bf16.mxu0 %v879
        %927 = vmatpush1.bf16.msra.mxu0 %v878
        %928 = vmatprep.subr.bf16.mxu0 %v882
        %929 = vmatpush1.bf16.msra.mxu0 %v881
        %930 = vmatprep.subr.bf16.mxu0 %v885
        %931 = vmatpush1.bf16.msra.mxu0 %v884
        %932 = vmatprep.subr.bf16.mxu0 %v888
        %933 = vmatpush1.bf16.msra.mxu0 %v887
        %934 = vmatprep.subr.bf16.mxu0 %v891
        %935 = vmatpush1.bf16.msra.mxu0 %v890
        %936 = vmatprep.subr.bf16.mxu0 %v894
        %937 = vmatpush1.bf16.msra.mxu0 %v893
        %938 = vmatprep.subr.bf16.mxu0 %v897
        %939 = vmatpush1.bf16.msra.mxu0 %v896
        %940 = vmatprep.subr.bf16.mxu0 %v900
        %941 = vmatpush1.bf16.msra.mxu0 %v899
        %942 = vmatprep.subr.bf16.mxu0 0
        %943 = vmatpush1.bf16.msra.mxu0 0
        %944 = vmatprep.subr.bf16.mxu0 0
        %945 = vmatpush1.bf16.msra.mxu0 0
        %946 = vmatprep.subr.bf16.mxu0 0
        %947 = vmatpush1.bf16.msra.mxu0 0
        %948 = vmatprep.subr.bf16.mxu0 0
        %949 = vmatpush1.bf16.msra.mxu0 0
        %950 = vmatprep.subr.bf16.mxu0 0
        %951 = vmatpush1.bf16.msra.mxu0 0
        %952 = vmatprep.subr.bf16.mxu0 0
        %953 = vmatpush1.bf16.msra.mxu0 0
        %954 = vmatprep.subr.bf16.mxu0 0
        %955 = vmatpush1.bf16.msra.mxu0 0
        %956 = vmatprep.subr.bf16.mxu0 0
        %957 = vmatpush1.bf16.msra.mxu0 0
        %958 = vmatprep.mubr.bf16.mxu0 0
        %959 = vmatmul.mubr.bf16.gmra.mrb[0].mxu0 %v758
        %v960 = vpop.f32.mrb[0].mxu0
        %v961 = vadd.f32 0.0, %v960
        %v962 = vpop.f32.mrb[0].mxu0
        %v963 = vadd.f32 0.0, %v962
        %v964 = vpop.f32.mrb[0].mxu0
        %v965 = vadd.f32 0.0, %v964
        %v966 = vpop.f32.mrb[0].mxu0
        %v967 = vadd.f32 0.0, %v966
        %968 = vmatprep.mubr.bf16.mxu0 0
        %969 = vmatmul.mubr.bf16.gmra.mrb[0].mxu0 %v759
        %v970 = vpop.f32.mrb[0].mxu0
        %v971 = vadd.f32 0.0, %v970
        %v972 = vpop.f32.mrb[0].mxu0
        %v973 = vadd.f32 0.0, %v972
        %v974 = vpop.f32.mrb[0].mxu0
        %v975 = vadd.f32 0.0, %v974
        %v976 = vpop.f32.mrb[0].mxu0
        %v977 = vadd.f32 0.0, %v976
        %978 = vmatprep.mubr.bf16.mxu0 0
        %979 = vmatmul.mubr.bf16.gmra.mrb[0].mxu0 %v760
        %v980 = vpop.f32.mrb[0].mxu0
        %v981 = vadd.f32 0.0, %v980
        %v982 = vpop.f32.mrb[0].mxu0
        %v983 = vadd.f32 0.0, %v982
        %v984 = vpop.f32.mrb[0].mxu0
        %v985 = vadd.f32 0.0, %v984
        %v986 = vpop.f32.mrb[0].mxu0
        %v987 = vadd.f32 0.0, %v986
        %988 = vmatprep.mubr.bf16.mxu0 0
        %989 = vmatmul.mubr.bf16.gmra.mrb[0].mxu0 %v761
        %v990 = vpop.f32.mrb[0].mxu0
        %v991 = vadd.f32 0.0, %v990
        %v992 = vpop.f32.mrb[0].mxu0
        %v993 = vadd.f32 0.0, %v992
        %v994 = vpop.f32.mrb[0].mxu0
        %v995 = vadd.f32 0.0, %v994
        %v996 = vpop.f32.mrb[0].mxu0
        %v997 = vadd.f32 0.0, %v996
        %998 = vmatprep.mubr.bf16.mxu0 0
        %999 = vmatmul.mubr.bf16.gmra.mrb[0].mxu0 %v762
        %v1000 = vpop.f32.mrb[0].mxu0
        %v1001 = vadd.f32 0.0, %v1000
        %v1002 = vpop.f32.mrb[0].mxu0
        %v1003 = vadd.f32 0.0, %v1002
        %v1004 = vpop.f32.mrb[0].mxu0
        %v1005 = vadd.f32 0.0, %v1004
        %v1006 = vpop.f32.mrb[0].mxu0
        %v1007 = vadd.f32 0.0, %v1006
        %1008 = vmatprep.mubr.bf16.mxu0 0
        %1009 = vmatmul.mubr.bf16.gmra.mrb[0].mxu0 %v763
        %v1010 = vpop.f32.mrb[0].mxu0
        %v1011 = vadd.f32 0.0, %v1010
        %v1012 = vpop.f32.mrb[0].mxu0
        %v1013 = vadd.f32 0.0, %v1012
        %v1014 = vpop.f32.mrb[0].mxu0
        %v1015 = vadd.f32 0.0, %v1014
        %v1016 = vpop.f32.mrb[0].mxu0
        %v1017 = vadd.f32 0.0, %v1016
        %1018 = vmatprep.mubr.bf16.mxu0 0
        %1019 = vmatmul.mubr.bf16.gmra.mrb[0].mxu0 %v764
        %v1020 = vpop.f32.mrb[0].mxu0
        %v1021 = vadd.f32 0.0, %v1020
        %v1022 = vpop.f32.mrb[0].mxu0
        %v1023 = vadd.f32 0.0, %v1022
        %v1024 = vpop.f32.mrb[0].mxu0
        %v1025 = vadd.f32 0.0, %v1024
        %v1026 = vpop.f32.mrb[0].mxu0
        %v1027 = vadd.f32 0.0, %v1026
        %1028 = vmatprep.mubr.bf16.mxu0 0
        %1029 = vmatmul.mubr.bf16.gmra.mrb[0].mxu0 %v765
        %v1030 = vpop.f32.mrb[0].mxu0
        %v1031 = vadd.f32 0.0, %v1030
        %v1032 = vpop.f32.mrb[0].mxu0
        %v1033 = vadd.f32 0.0, %v1032
        %v1034 = vpop.f32.mrb[0].mxu0
        %v1035 = vadd.f32 0.0, %v1034
        %v1036 = vpop.f32.mrb[0].mxu0
        %v1037 = vadd.f32 0.0, %v1036
        %1038 = vdwg.mxu0
        %1039 = vmatprep.subr.bf16.mxu0 0
        %1040 = vmatpush1.bf16.msra.mxu0 %v880
        %1041 = vmatprep.subr.bf16.mxu0 0
        %1042 = vmatpush1.bf16.msra.mxu0 %v883
        %1043 = vmatprep.subr.bf16.mxu0 0
        %1044 = vmatpush1.bf16.msra.mxu0 %v886
        %1045 = vmatprep.subr.bf16.mxu0 0
        %1046 = vmatpush1.bf16.msra.mxu0 %v889
        %1047 = vmatprep.subr.bf16.mxu0 0
        %1048 = vmatpush1.bf16.msra.mxu0 %v892
        %1049 = vmatprep.subr.bf16.mxu0 0
        %1050 = vmatpush1.bf16.msra.mxu0 %v895
        %1051 = vmatprep.subr.bf16.mxu0 0
        %1052 = vmatpush1.bf16.msra.mxu0 %v898
        %1053 = vmatprep.subr.bf16.mxu0 0
        %1054 = vmatpush1.bf16.msra.mxu0 %v901
        %1055 = vmatprep.subr.bf16.mxu0 0
        %1056 = vmatpush1.bf16.msra.mxu0 0
        %1057 = vmatprep.subr.bf16.mxu0 0
        %1058 = vmatpush1.bf16.msra.mxu0 0
        %1059 = vmatprep.subr.bf16.mxu0 0
        %1060 = vmatpush1.bf16.msra.mxu0 0
        %1061 = vmatprep.subr.bf16.mxu0 0
        %1062 = vmatpush1.bf16.msra.mxu0 0
        %1063 = vmatprep.subr.bf16.mxu0 0
        %1064 = vmatpush1.bf16.msra.mxu0 0
        %1065 = vmatprep.subr.bf16.mxu0 0
        %1066 = vmatpush1.bf16.msra.mxu0 0
        %1067 = vmatprep.subr.bf16.mxu0 0
        %1068 = vmatpush1.bf16.msra.mxu0 0
        %1069 = vmatprep.subr.bf16.mxu0 0
        %1070 = vmatpush1.bf16.msra.mxu0 0
        %1071 = vmatprep.mubr.bf16.mxu0 0
        %1072 = vmatmul.mubr.bf16.gmra.mrb[0].mxu0 %v758
        %v1073 = vpop.f32.mrb[0].mxu0
        %v1074 = vadd.f32 0.0, %v1073
        %v1075 = vpop.f32.mrb[0].mxu0
        %v1076 = vpop.f32.mrb[0].mxu0
        %v1077 = vadd.f32 0.0, %v1076
        %v1078 = vpop.f32.mrb[0].mxu0
        %1079 = vmatprep.mubr.bf16.mxu0 0
        %1080 = vmatmul.mubr.bf16.gmra.mrb[0].mxu0 %v759
        %v1081 = vpop.f32.mrb[0].mxu0
        %v1082 = vadd.f32 0.0, %v1081
        %v1083 = vpop.f32.mrb[0].mxu0
        %v1084 = vpop.f32.mrb[0].mxu0
        %v1085 = vadd.f32 0.0, %v1084
        %v1086 = vpop.f32.mrb[0].mxu0
        %1087 = vmatprep.mubr.bf16.mxu0 0
        %1088 = vmatmul.mubr.bf16.gmra.mrb[0].mxu0 %v760
        %v1089 = vpop.f32.mrb[0].mxu0
        %v1090 = vadd.f32 0.0, %v1089
        %v1091 = vpop.f32.mrb[0].mxu0
        %v1092 = vpop.f32.mrb[0].mxu0
        %v1093 = vadd.f32 0.0, %v1092
        %v1094 = vpop.f32.mrb[0].mxu0
        %1095 = vmatprep.mubr.bf16.mxu0 0
        %1096 = vmatmul.mubr.bf16.gmra.mrb[0].mxu0 %v761
        %v1097 = vpop.f32.mrb[0].mxu0
        %v1098 = vadd.f32 0.0, %v1097
        %v1099 = vpop.f32.mrb[0].mxu0
        %v1100 = vpop.f32.mrb[0].mxu0
        %v1101 = vadd.f32 0.0, %v1100
        %v1102 = vpop.f32.mrb[0].mxu0
        %1103 = vmatprep.mubr.bf16.mxu0 0
        %1104 = vmatmul.mubr.bf16.gmra.mrb[0].mxu0 %v762
        %v1105 = vpop.f32.mrb[0].mxu0
        %v1106 = vadd.f32 0.0, %v1105
        %v1107 = vpop.f32.mrb[0].mxu0
        %v1108 = vpop.f32.mrb[0].mxu0
        %v1109 = vadd.f32 0.0, %v1108
        %v1110 = vpop.f32.mrb[0].mxu0
        %1111 = vmatprep.mubr.bf16.mxu0 0
        %1112 = vmatmul.mubr.bf16.gmra.mrb[0].mxu0 %v763
        %v1113 = vpop.f32.mrb[0].mxu0
        %v1114 = vadd.f32 0.0, %v1113
        %v1115 = vpop.f32.mrb[0].mxu0
        %v1116 = vpop.f32.mrb[0].mxu0
        %v1117 = vadd.f32 0.0, %v1116
        %v1118 = vpop.f32.mrb[0].mxu0
        %1119 = vmatprep.mubr.bf16.mxu0 0
        %1120 = vmatmul.mubr.bf16.gmra.mrb[0].mxu0 %v764
        %v1121 = vpop.f32.mrb[0].mxu0
        %v1122 = vadd.f32 0.0, %v1121
        %v1123 = vpop.f32.mrb[0].mxu0
        %v1124 = vpop.f32.mrb[0].mxu0
        %v1125 = vadd.f32 0.0, %v1124
        %v1126 = vpop.f32.mrb[0].mxu0
        %1127 = vmatprep.mubr.bf16.mxu0 0
        %1128 = vmatmul.mubr.bf16.gmra.mrb[0].mxu0 %v765
        %v1129 = vpop.f32.mrb[0].mxu0
        %v1130 = vadd.f32 0.0, %v1129
        %v1131 = vpop.f32.mrb[0].mxu0
        %v1132 = vpop.f32.mrb[0].mxu0
        %v1133 = vadd.f32 0.0, %v1132
        %v1134 = vpop.f32.mrb[0].mxu0
        %1135 = vdwg.mxu0
        %v1136 = vpack.c.bf16 %v965, %v961
        %v1137 = vpack.c.bf16 %v967, %v963
        %v1138 = vpack.c.bf16 %v1077, %v1074
        %v1139 = vpack.c.bf16 %v975, %v971
        %v1140 = vpack.c.bf16 %v977, %v973
        %v1141 = vpack.c.bf16 %v1085, %v1082
        %v1142 = vpack.c.bf16 %v985, %v981
        %v1143 = vpack.c.bf16 %v987, %v983
        %v1144 = vpack.c.bf16 %v1093, %v1090
        %v1145 = vpack.c.bf16 %v995, %v991
        %v1146 = vpack.c.bf16 %v997, %v993
        %v1147 = vpack.c.bf16 %v1101, %v1098
        %v1148 = vpack.c.bf16 %v1005, %v1001
        %v1149 = vpack.c.bf16 %v1007, %v1003
        %v1150 = vpack.c.bf16 %v1109, %v1106
        %v1151 = vpack.c.bf16 %v1015, %v1011
        %v1152 = vpack.c.bf16 %v1017, %v1013
        %v1153 = vpack.c.bf16 %v1117, %v1114
        %v1154 = vpack.c.bf16 %v1025, %v1021
        %v1155 = vpack.c.bf16 %v1027, %v1023
        %v1156 = vpack.c.bf16 %v1125, %v1122
        %v1157 = vpack.c.bf16 %v1035, %v1031
        %v1158 = vpack.c.bf16 %v1037, %v1033
        %v1159 = vpack.c.bf16 %v1133, %v1130
        %v1184 = vunpack.c.l.b16 %v1136
        %v1185 = vunpack.c.l.b16 %v1137
        %v1186 = vunpack.c.l.b16 %v1138
        %v1187 = vunpack.c.h.b16 %v1136
        %v1188 = vunpack.c.h.b16 %v1137
        %v1189 = vunpack.c.h.b16 %v1138
        %v1190 = vunpack.c.l.b16 %v1139
        %v1191 = vunpack.c.l.b16 %v1140
        %v1192 = vunpack.c.l.b16 %v1141
        %v1193 = vunpack.c.h.b16 %v1139
        %v1194 = vunpack.c.h.b16 %v1140
        %v1195 = vunpack.c.h.b16 %v1141
        %v1196 = vunpack.c.l.b16 %v1142
        %v1197 = vunpack.c.l.b16 %v1143
        %v1198 = vunpack.c.l.b16 %v1144
        %v1199 = vunpack.c.h.b16 %v1142
        %v1200 = vunpack.c.h.b16 %v1143
        %v1201 = vunpack.c.h.b16 %v1144
        %v1202 = vunpack.c.l.b16 %v1145
        %v1203 = vunpack.c.l.b16 %v1146
        %v1204 = vunpack.c.l.b16 %v1147
        %v1205 = vunpack.c.h.b16 %v1145
        %v1206 = vunpack.c.h.b16 %v1146
        %v1207 = vunpack.c.h.b16 %v1147
        %v1208 = vunpack.c.l.b16 %v1148
        %v1209 = vunpack.c.l.b16 %v1149
        %v1210 = vunpack.c.l.b16 %v1150
        %v1211 = vunpack.c.h.b16 %v1148
        %v1212 = vunpack.c.h.b16 %v1149
        %v1213 = vunpack.c.h.b16 %v1150
        %v1214 = vunpack.c.l.b16 %v1151
        %v1215 = vunpack.c.l.b16 %v1152
        %v1216 = vunpack.c.l.b16 %v1153
        %v1217 = vunpack.c.h.b16 %v1151
        %v1218 = vunpack.c.h.b16 %v1152
        %v1219 = vunpack.c.h.b16 %v1153
        %v1220 = vunpack.c.l.b16 %v1154
        %v1221 = vunpack.c.l.b16 %v1155
        %v1222 = vunpack.c.l.b16 %v1156
        %v1223 = vunpack.c.h.b16 %v1154
        %v1224 = vunpack.c.h.b16 %v1155
        %v1225 = vunpack.c.h.b16 %v1156
        %v1226 = vunpack.c.l.b16 %v1157
        %v1227 = vunpack.c.l.b16 %v1158
        %v1228 = vunpack.c.l.b16 %v1159
        %v1229 = vunpack.c.h.b16 %v1157
        %v1230 = vunpack.c.h.b16 %v1158
        %v1231 = vunpack.c.h.b16 %v1159
        %v1232 = vpack.c.b16 %v1185, %v1184
        %v1233 = vpack.c.b16 %v1186, %v1186
        %v1234 = vpack.c.b16 %v1188, %v1187
        %v1235 = vpack.c.b16 %v1189, %v1189
        %v1236 = vpack.c.b16 %v1191, %v1190
        %v1237 = vpack.c.b16 %v1192, %v1192
        %v1238 = vpack.c.b16 %v1194, %v1193
        %v1239 = vpack.c.b16 %v1195, %v1195
        %v1240 = vpack.c.b16 %v1197, %v1196
        %v1241 = vpack.c.b16 %v1198, %v1198
        %v1242 = vpack.c.b16 %v1200, %v1199
        %v1243 = vpack.c.b16 %v1201, %v1201
        %v1244 = vpack.c.b16 %v1203, %v1202
        %v1245 = vpack.c.b16 %v1204, %v1204
        %v1246 = vpack.c.b16 %v1206, %v1205
        %v1247 = vpack.c.b16 %v1207, %v1207
        %v1248 = vpack.c.b16 %v1209, %v1208
        %v1249 = vpack.c.b16 %v1210, %v1210
        %v1250 = vpack.c.b16 %v1212, %v1211
        %v1251 = vpack.c.b16 %v1213, %v1213
        %v1252 = vpack.c.b16 %v1215, %v1214
        %v1253 = vpack.c.b16 %v1216, %v1216
        %v1254 = vpack.c.b16 %v1218, %v1217
        %v1255 = vpack.c.b16 %v1219, %v1219
        %v1256 = vpack.c.b16 %v1221, %v1220
        %v1257 = vpack.c.b16 %v1222, %v1222
        %v1258 = vpack.c.b16 %v1224, %v1223
        %v1259 = vpack.c.b16 %v1225, %v1225
        %v1260 = vpack.c.b16 %v1227, %v1226
        %v1261 = vpack.c.b16 %v1228, %v1228
        %v1262 = vpack.c.b16 %v1230, %v1229
        %v1263 = vpack.c.b16 %v1231, %v1231
        %1296 = vst [vmem:[%s397] sm:$0xff] %v1232
        %1297 = vst [vmem:[%s397 + $0x8] sm:$0xf] %v1233
        %1298 = vst [vmem:[%s397 + $0xc] sm:$0xff] %v1234
        %1299 = vst [vmem:[%s397 + $0x14] sm:$0xf] %v1235
        %1300 = vst [vmem:[%s397 + $0x18] sm:$0xff] %v1236
        %1301 = vst [vmem:[%s397 + $0x20] sm:$0xf] %v1237
        %1302 = vst [vmem:[%s397 + $0x24] sm:$0xff] %v1238
        %1303 = vst [vmem:[%s397 + $0x2c] sm:$0xf] %v1239
        %1304 = vst [vmem:[%s397 + $0x30] sm:$0xff] %v1240
        %1305 = vst [vmem:[%s397 + $0x38] sm:$0xf] %v1241
        %1306 = vst [vmem:[%s397 + $0x3c] sm:$0xff] %v1242
        %1307 = vst [vmem:[%s397 + $0x44] sm:$0xf] %v1243
        %1308 = vst [vmem:[%s397 + $0x48] sm:$0xff] %v1244
        %1309 = vst [vmem:[%s397 + $0x50] sm:$0xf] %v1245
        %1310 = vst [vmem:[%s397 + $0x54] sm:$0xff] %v1246
        %1311 = vst [vmem:[%s397 + $0x5c] sm:$0xf] %v1247
        %1312 = vst [vmem:[%s397 + $0x60] sm:$0xff] %v1248
        %1313 = vst [vmem:[%s397 + $0x68] sm:$0xf] %v1249
        %1314 = vst [vmem:[%s397 + $0x6c] sm:$0xff] %v1250
        %1315 = vst [vmem:[%s397 + $0x74] sm:$0xf] %v1251
        %1316 = vst [vmem:[%s397 + $0x78] sm:$0xff] %v1252
        %1317 = vst [vmem:[%s397 + $0x80] sm:$0xf] %v1253
        %1318 = vst [vmem:[%s397 + $0x84] sm:$0xff] %v1254
        %1319 = vst [vmem:[%s397 + $0x8c] sm:$0xf] %v1255
        %1320 = vst [vmem:[%s397 + $0x90] sm:$0xff] %v1256
        %1321 = vst [vmem:[%s397 + $0x98] sm:$0xf] %v1257
        %1322 = vst [vmem:[%s397 + $0x9c] sm:$0xff] %v1258
        %1323 = vst [vmem:[%s397 + $0xa4] sm:$0xf] %v1259
        %1324 = vst [vmem:[%s397 + $0xa8] sm:$0xff] %v1260
        %1325 = vst [vmem:[%s397 + $0xb0] sm:$0xf] %v1261
        %1326 = vst [vmem:[%s397 + $0xb4] sm:$0xff] %v1262
        %1327 = vst [vmem:[%s397 + $0xbc] sm:$0xf] %v1263
        %s1328 = sand.u32 %s194, 1
        %s1329 = scalar_lea.sflag [#allocation4], %s1328
        %s1330 = sand.u32 %s194, 1
        %s1331 = smul.addr %s1330, 128
        %s1332 = scalar_lea.vmem [#allocation10], %s1331
        %s1333 = sand.u32 %s222, 1
        %s1334 = scalar_lea.sflag [#allocation12], %s1333
        %s1335 = sand.u32 %s222, 1
        %s1336 = smul.addr %s1335, 192
        %s1337 = scalar_lea.vmem [#allocation11], %s1336
        // Predicated region
        $region61: #{tpu_custom_call.1} parent=43 // pred_check
          %p1338 = pneg %p204
        $region62: #{tpu_custom_call.1} parent=43 // pred_check_branch
          %1340 = sbr.rel (%p1338) target = $region64
        $region63: #{tpu_custom_call.1} parent=43 // pred_region
          %s1341 = smul.u32 16, %s37
          %s1343 = ssub.s32 2048, 2048
          %1344 = vsyncadd %s1329, %s1343
          %s1345 = smul.addr %s36, 32
          %s1346 = sadd.s32 %s1341, %s1345
          %s1347 = smul.addr %s1346, 128
          %s1348 = scalar_lea.hbm %s6, %s1347
          %s1349 = sshll.u32 %s1332, 4
          %s1350 = int_to_ptr.vmem [resolvable:$true] %s1349
          %1355 = dma.vmem_to_hbm [thread:$0]  %s1350, 2048, %s1348, %s1329, 128, 128, 8
        $region64: #{tpu_custom_call.1} parent=43 // pred_fallthru
          _
        // Predicated region
        $region65: #{tpu_custom_call.1} parent=43 // pred_check
          %p1356 = pneg %p232
        $region66: #{tpu_custom_call.1} parent=43 // pred_check_branch
          %1358 = sbr.rel (%p1356) target = $region68
        $region67: #{tpu_custom_call.1} parent=43 // pred_region
          %s1359 = smul.u32 16, %s37
          %s1361 = ssub.s32 3072, 3072
          %1362 = vsyncadd %s1334, %s1361
          %s1363 = smul.addr %s1359, 3
          %s1364 = smul.addr %s36, 96
          %s1365 = sadd.s32 %s1363, %s1364
          %s1366 = smul.addr %s1365, 64
          %s1367 = scalar_lea.hbm %s7, %s1366
          %s1368 = sshll.u32 %s1337, 4
          %s1369 = int_to_ptr.vmem [resolvable:$true] %s1368
          %1374 = dma.vmem_to_hbm [thread:$0]  %s1369, 3072, %s1367, %s1334, 192, 192, 12
        $region68: #{tpu_custom_call.1} parent=43 // pred_fallthru
          _
      $region44: #{tpu_custom_call.1} parent=5 // pred_fallthru
        _
      %p1375 = scmp.le.s32.totalorder 2, %s27
      // Predicated region
      $region69: #{tpu_custom_call.1} parent=5 // pred_check
        %p1376 = pneg %p1375
      $region70: #{tpu_custom_call.1} parent=5 // pred_check_branch
        %1378 = sbr.rel (%p1376) target = $region72
      $region71: #{tpu_custom_call.1} parent=5 // pred_region
        %s1379 = ssub.s32 %s27, 2
        // Predicated region
        $region73: #{tpu_custom_call.1} parent=71 // pred_check
          %p1380 = pneg %p210
        $region74: #{tpu_custom_call.1} parent=71 // pred_check_branch
          %1382 = sbr.rel (%p1380) target = $region76
        $region75: #{tpu_custom_call.1} parent=71 // pred_region
          %s1383 = sand.u32 %s195, 1
          %s1384 = scalar_lea.sflag [#allocation4], %s1383
          %s1385 = sand.u32 %s195, 1
          %s1386 = smul.addr %s1385, 128
          %s1387 = scalar_lea.vmem [#allocation10], %s1386
          %1388 = dma.done %s1384, 2048
        $region76: #{tpu_custom_call.1} parent=71 // pred_fallthru
          _
        // Predicated region
        $region77: #{tpu_custom_call.1} parent=71 // pred_check
          %p1389 = pneg %p238
        $region78: #{tpu_custom_call.1} parent=71 // pred_check_branch
          %1391 = sbr.rel (%p1389) target = $region80
        $region79: #{tpu_custom_call.1} parent=71 // pred_region
          %s1392 = sand.u32 %s223, 1
          %s1393 = scalar_lea.sflag [#allocation12], %s1392
          %s1394 = sand.u32 %s223, 1
          %s1395 = smul.addr %s1394, 192
          %s1396 = scalar_lea.vmem [#allocation11], %s1395
          %1397 = dma.done %s1393, 3072
        $region80: #{tpu_custom_call.1} parent=71 // pred_fallthru
          _
      $region72: #{tpu_custom_call.1} parent=5 // pred_fallthru
        _
    $region6: #{tpu_custom_call.1} parent=1 // loop_footer
      %s31 = sadd.s32 1, %s27
    $region7: #{tpu_custom_call.1} parent=1 // loop_footer_branch
      %26 = sbr.rel target = $region3
    $region8: #{tpu_custom_call.1} parent=1 // loop_exit
      _
    %1398 = vsyncpa [#allocation3], 1
    %s1399 = scalar_lea.sflag [#allocation3], 1
    %1400 = vsyncpa %s1399, 1
    %1401 = vsyncpa [#allocation8], 1
    %s1402 = scalar_lea.sflag [#allocation8], 1
    %1403 = vsyncpa %s1402, 1
    %1404 = vsyncpa [#allocation4], 1
    %s1405 = scalar_lea.sflag [#allocation4], 1
    %1406 = vsyncpa %s1405, 1
    %1407 = vsyncpa [#allocation12], 1
    %s1408 = scalar_lea.sflag [#allocation12], 1
    %1409 = vsyncpa %s1408, 1
    %1410 = vsyncpa [#allocation5], 1
    %s1411 = scalar_lea.sflag [#allocation5], 1
    %1412 = vsyncpa %s1411, 1

</llo_original>
